<compile_context>
chip_gen: v5e
topology: v5e:2x2
jax: 0.10.0
libtpu: 0.0.40
codegen_flags: <defaults>
</compile_context>

<pallas_src>
import functools
import math

import jax
import jax.numpy as jnp
from jax.experimental import pallas as pl
from jax.experimental.pallas import tpu as pltpu


def _choose_out_tile(HW):
    """Output-pixel tile (lane dim of the out block): 128-multiple dividing HW."""
    if HW > 256 and HW % 256 == 0:
        return 256          # fills the 256-wide MXU on v6e/v7x
    if HW > 128 and HW % 128 == 0:
        return 128
    # TODO(synk): pad HW to a multiple of 128 for awkward sizes; a full-HW tile
    # reintroduces masked partial stores but stays correct for small images.
    return HW


def _choose_k_chunk(HW):
    """Source chunk (K dim of the one-hot gather): bounded, 128-multiple, divides HW."""
    for cand in (1024, 512, 256, 128):
        if HW % cand == 0:
            return cand
    return HW


def _spatial_transformer_kernel(kstart_ref, kcount_ref,        # scalar prefetch (SMEM)
                                base_ref, flow_ref, src_ref,   # inputs
                                out_ref,                       # output
                                acc_ref,                       # VMEM scratch
                                *, H, W, K_chunk):
    # base_ref : (2, T)          base (row, col) coords of this output tile
    # flow_ref : (1, 2, T)       displacement field for this (batch, tile)
    # src_ref  : (1, C, K_chunk) one lane-dense source window chunk
    # out_ref  : (1, C, T)       warped output tile (lane dense)
    # acc_ref  : (C, T) f32      accumulator, resident across the K grid axis
    b = pl.program_id(0)
    t = pl.program_id(1)
    k = pl.program_id(2)
    nt = pl.num_programs(1)
    nk = pl.num_programs(2)
    lin = b * nt + t

    @pl.when(k == 0)
    def _init():
        acc_ref[...] = jnp.zeros_like(acc_ref)

    # Skip chunks outside this tile's (prefetched) source window.
    @pl.when(k < kcount_ref[lin])
    def _work():
        base = base_ref[...].astype(jnp.float32)           # (2, T)
        fl = flow_ref[0].astype(jnp.float32)               # (2, T)
        y = base[0:1, :] + fl[0:1, :]                      # (1, T) abs row coord
        x = base[1:2, :] + fl[1:2, :]                      # (1, T) abs col coord
        y0 = jnp.floor(y)
        x0 = jnp.floor(x)
        wy = y - y0
        wx = x - x0

        # Global flattened source index of each sublane of this chunk.
        off = (kstart_ref[lin] + k) * K_chunk
        rows_global = off + jax.lax.broadcasted_iota(jnp.int32, (K_chunk, 1), 0)

        src_chunk = src_ref[0]                             # (C, K_chunk), native dtype

        # TODO(synk): a direct lane-axis dynamic gather (jnp.take) would replace
        # the one-hot matmuls entirely but has no robust Mosaic lowering for
        # arbitrary HW; keep the MXU one-hot contraction.
        def corner(dy, dx):
            yy = y0 + dy
            xx = x0 + dx
            w = (wy if dy else (1.0 - wy)) * (wx if dx else (1.0 - wx))
            valid = (yy >= 0.0) & (yy <= H - 1.0) & (xx >= 0.0) & (xx <= W - 1.0)
            w = jnp.where(valid, w, 0.0)                   # zeros padding for OOB
            idx = (jnp.clip(yy, 0.0, H - 1.0) * W
                   + jnp.clip(xx, 0.0, W - 1.0)).astype(jnp.int32)   # (1, T)
            # Pure 0/1 one-hot: bilinear weights are applied to the small (C, T)
            # matmul result instead of the big (K_chunk, T) block.
            onehot = (rows_global == idx).astype(src_chunk.dtype)    # (K_chunk, T)
            g = jnp.dot(src_chunk, onehot, preferred_element_type=jnp.float32)
            return w * g                                   # (C, T) f32

        acc_ref[...] += (corner(0, 0) + corner(0, 1)
                         + corner(1, 0) + corner(1, 1))

    @pl.when(k == nk - 1)
    def _finalize():
        out_ref[0] = acc_ref[...].astype(out_ref.dtype)


def spatial_transformer(src, flow, *, max_row_disp=None):
    """VoxelMorph SpatialTransformer forward (2-D, NCHW, bilinear, zeros padding).

    src : (B, C, H, W); flow : (B, 2, H, W).
    max_row_disp : optional *static* upper bound on |flow[:, 0]| in pixels. When
      given, the per-tile source window (gather K dimension) is shrunk
      accordingly, reducing grid steps, DMA traffic and one-hot work.  When
      None, the window conservatively covers the whole image (always correct).
    """
    B, C, H, W = src.shape
    assert flow.shape == (B, 2, H, W)
    HW = H * W
    T = _choose_out_tile(HW)
    K_chunk = _choose_k_chunk(HW)
    num_tiles = HW // T
    total_k_blks = HW // K_chunk

    if max_row_disp is None:
        num_k_blks = total_k_blks
    else:
        # Rows a tile of T flattened output pixels can touch, plus displacement.
        span_rows = (T - 1) // W + 2 + 2 * int(math.ceil(float(max_row_disp))) + 1
        span_elems = span_rows * W
        num_k_blks = min(total_k_blks, -(-span_elems // K_chunk) + 1)

    # Wrapper-side flattening: the kernel sees lane-dense (..., HW) slabs.
    src2 = src.reshape(B, C, HW)
    flow2 = flow.reshape(B, 2, HW)

    # Base sampling grid (the torch module's registered `grid` buffer), flattened.
    pix = jnp.arange(HW, dtype=jnp.int32)
    rows_f = (pix // W).astype(jnp.float32)
    cols_f = (pix % W).astype(jnp.float32)
    base = jnp.stack([rows_f, cols_f], axis=0)             # (2, HW)

    # Per-(batch, tile) source-row window from the actual flow (cheap XLA
    # reduction); fed to the kernel and the src index_map via scalar prefetch.
    y_abs = rows_f[None, :] + flow2[:, 0, :]               # (B, HW)
    y_t = y_abs.reshape(B, num_tiles, T)
    lo_row = jnp.clip(jnp.floor(jnp.min(y_t, axis=-1)), 0.0, H - 1.0)
    hi_row = jnp.clip(jnp.floor(jnp.max(y_t, axis=-1)) + 1.0, 0.0, H - 1.0)
    lo_elem = lo_row.astype(jnp.int32) * W
    hi_elem = (hi_row.astype(jnp.int32) + 1) * W - 1
    kstart_blk = lo_elem // K_chunk
    kend_blk = hi_elem // K_chunk
    kstart = jnp.clip(kstart_blk, 0, total_k_blks - num_k_blks)
    kcount = jnp.clip(kend_blk - kstart + 1, 1, num_k_blks)
    kstart_flat = kstart.reshape(-1).astype(jnp.int32)     # (B * num_tiles,)
    kcount_flat = kcount.reshape(-1).astype(jnp.int32)

    kernel = functools.partial(_spatial_transformer_kernel,
                               H=H, W=W, K_chunk=K_chunk)
    grid_spec = pltpu.PrefetchScalarGridSpec(
        num_scalar_prefetch=2,
        grid=(B, num_tiles, num_k_blks),
        in_specs=[
            pl.BlockSpec((2, T), lambda b, t, k, ks, kc: (0, t)),
            pl.BlockSpec((1, 2, T), lambda b, t, k, ks, kc: (b, 0, t)),
            pl.BlockSpec((1, C, K_chunk),
                         lambda b, t, k, ks, kc: (b, 0, ks[b * num_tiles + t] + k)),
        ],
        out_specs=pl.BlockSpec((1, C, T), lambda b, t, k, ks, kc: (b, 0, t)),
        scratch_shapes=[pltpu.VMEM((C, T), jnp.float32)],
    )
    out2 = pl.pallas_call(
        kernel,
        out_shape=jax.ShapeDtypeStruct((B, C, HW), src.dtype),
        grid_spec=grid_spec,
        compiler_params=pltpu.CompilerParams(
            dimension_semantics=("parallel", "parallel", "arbitrary")),
    )(kstart_flat, kcount_flat, base, flow2, src2)
    return out2.reshape(B, C, H, W)


def _reference(src, flow):
    """Plain-JAX reference of grid_sample(align_corners=True, zeros padding)."""
    B, C, H, W = src.shape
    ii = jnp.arange(H, dtype=jnp.float32)[:, None]
    jj = jnp.arange(W, dtype=jnp.float32)[None, :]
    y = ii + flow[:, 0]
    x = jj + flow[:, 1]
    y0 = jnp.floor(y)
    x0 = jnp.floor(x)
    wy = y - y0
    wx = x - x0
    src_flat = src.reshape(B, C, H * W)
    out = jnp.zeros_like(src)
    for dy in (0, 1):
        for dx in (0, 1):
            yy = y0 + dy
            xx = x0 + dx
            w = (wy if dy else 1.0 - wy) * (wx if dx else 1.0 - wx)
            valid = (yy >= 0) & (yy <= H - 1) & (xx >= 0) & (xx <= W - 1)
            w = jnp.where(valid, w, 0.0)
            idx = (jnp.clip(yy, 0, H - 1) * W
                   + jnp.clip(xx, 0, W - 1)).astype(jnp.int32)
            gathered = jnp.take_along_axis(
                src_flat, idx.reshape(B, 1, H * W), axis=2)
            out = out + w[:, None] * gathered.reshape(B, C, H, W)
    return out


if __name__ == "__main__":
    key = jax.random.PRNGKey(0)
    k_src, k_flow, k_src2, k_flow2 = jax.random.split(key, 4)

    # Small shape consistent with the module spec.
    B, C, H, W = 2, 4, 16, 16
    src = jax.random.normal(k_src, (B, C, H, W), dtype=jnp.float32)
    flow = 2.0 * jax.random.normal(k_flow, (B, 2, H, W), dtype=jnp.float32)

    out = spatial_transformer(
        src, flow, max_row_disp=float(jnp.max(jnp.abs(flow[:, 0]))))
    out = jax.block_until_ready(out)
    ref = _reference(src, flow)
    assert out.shape == (B, C, H, W)
    assert jnp.allclose(out, ref, atol=1e-5, rtol=1e-5), "mismatch (16x16)"

    # Slightly larger shape exercising the chunked / windowed gather path.
    B2, C2, H2, W2 = 1, 3, 48, 48
    srcb = jax.random.normal(k_src2, (B2, C2, H2, W2), dtype=jnp.float32)
    flowb = 2.0 * jax.random.normal(k_flow2, (B2, 2, H2, W2), dtype=jnp.float32)
    outb = spatial_transformer(
        srcb, flowb, max_row_disp=float(jnp.max(jnp.abs(flowb[:, 0]))))
    outb = jax.block_until_ready(outb)
    refb = _reference(srcb, flowb)
    assert jnp.allclose(outb, refb, atol=1e-5, rtol=1e-5), "mismatch (48x48)"

    print("KERNEL_OK")
</pallas_src>

<mosaic_0001>
module attributes {stable_mosaic.version = 11 : i64} {
  func.func @_spatial_transformer_kernel(%arg0: i32, %arg1: i32, %arg2: i32, %arg3: memref<4xi32, #tpu.memory_space<smem>>, %arg4: memref<4xi32, #tpu.memory_space<smem>>, %arg5: memref<2x128xf32, #tpu.memory_space<vmem>>, %arg6: memref<1x2x128xf32, #tpu.memory_space<vmem>>, %arg7: memref<1x4x256xf32, #tpu.memory_space<vmem>>, %arg8: memref<1x4x128xf32, #tpu.memory_space<vmem>>, %arg9: memref<4x128xf32, #tpu.memory_space<vmem>>) attributes {dimension_semantics = [#tpu.dimension_semantics<parallel>, #tpu.dimension_semantics<parallel>, #tpu.dimension_semantics<arbitrary>], iteration_bounds = array<i64: 2, 2, 1>, scalar_prefetch = 2 : i64, scratch_operands = 1 : i64, tpu.core_type = #tpu.core_type<tc>, window_params = [{transform_indices = @transform_0, window_bounds = array<i64: 2, 128>}, {transform_indices = @transform_1, window_bounds = array<i64: 1, 2, 128>}, {transform_indices = @transform_2, window_bounds = array<i64: 1, 4, 256>}, {transform_indices = @transform_3, window_bounds = array<i64: 1, 4, 128>}]} {
    %c2_i32 = arith.constant 2 : i32
    %0 = arith.muli %arg0, %c2_i32 : i32
    %1 = arith.addi %0, %arg1 : i32
    %c0_i32 = arith.constant 0 : i32
    %2 = arith.cmpi eq, %arg2, %c0_i32 : i32
    %3 = arith.extui %2 : i1 to i32
    %c0_i32_0 = arith.constant 0 : i32
    %4 = arith.cmpi ne, %3, %c0_i32_0 : i32
    scf.if %4 {
      %cst = arith.constant 0.000000e+00 : f32
      %13 = vector.broadcast %cst : f32 to vector<4x128xf32>
      %c0 = arith.constant 0 : index
      %c0_4 = arith.constant 0 : index
      %14 = vector.load %arg9[%c0, %c0_4] : memref<4x128xf32, #tpu.memory_space<vmem>>, vector<4x128xf32>
      tpu.vector_store %arg9[%c0, %c0_4], %13 {strides = array<i32>} : memref<4x128xf32, #tpu.memory_space<vmem>>, vector<4x128xf32>,
    } else {
    }
    %5 = arith.index_cast %1 : i32 to index
    %6 = memref.load %arg4[%5] : memref<4xi32, #tpu.memory_space<smem>>
    %7 = arith.cmpi slt, %arg2, %6 : i32
    %8 = arith.extui %7 : i1 to i32
    %c0_i32_1 = arith.constant 0 : i32
    %9 = arith.cmpi ne, %8, %c0_i32_1 : i32
    scf.if %9 {
      %c0 = arith.constant 0 : index
      %c0_4 = arith.constant 0 : index
      %13 = vector.load %arg5[%c0, %c0_4] : memref<2x128xf32, #tpu.memory_space<vmem>>, vector<2x128xf32>
      %c0_5 = arith.constant 0 : index
      %c0_6 = arith.constant 0 : index
      %c0_7 = arith.constant 0 : index
      %14 = vector.load %arg6[%c0_5, %c0_6, %c0_7] : memref<1x2x128xf32, #tpu.memory_space<vmem>>, vector<1x2x128xf32>
      %15 = vector.shape_cast %14 : vector<1x2x128xf32> to vector<2x128xf32>
      %16 = vector.extract_strided_slice %13 {offsets = [0, 0], sizes = [1, 128], strides = [1, 1]} : vector<2x128xf32> to vector<1x128xf32>
      %17 = vector.extract_strided_slice %15 {offsets = [0, 0], sizes = [1, 128], strides = [1, 1]} : vector<2x128xf32> to vector<1x128xf32>
      %18 = arith.addf %16, %17 : vector<1x128xf32>
      %19 = vector.extract_strided_slice %13 {offsets = [1, 0], sizes = [1, 128], strides = [1, 1]} : vector<2x128xf32> to vector<1x128xf32>
      %20 = vector.extract_strided_slice %15 {offsets = [1, 0], sizes = [1, 128], strides = [1, 1]} : vector<2x128xf32> to vector<1x128xf32>
      %21 = arith.addf %19, %20 : vector<1x128xf32>
      %22 = math.floor %18 : vector<1x128xf32>
      %23 = math.floor %21 : vector<1x128xf32>
      %24 = arith.subf %18, %22 : vector<1x128xf32>
      %25 = arith.subf %21, %23 : vector<1x128xf32>
      %26 = arith.index_cast %1 : i32 to index
      %27 = memref.load %arg3[%26] : memref<4xi32, #tpu.memory_space<smem>>
      %28 = arith.addi %27, %arg2 : i32
      %c256_i32 = arith.constant 256 : i32
      %29 = arith.muli %28, %c256_i32 : i32
      %30 = tpu.iota {dimensions = array<i32: 0>} : vector<256x1xi32>
      %31 = vector.broadcast %29 : i32 to vector<256x1xi32>
      %32 = arith.addi %31, %30 : vector<256x1xi32>
      %c0_8 = arith.constant 0 : index
      %c0_9 = arith.constant 0 : index
      %c0_10 = arith.constant 0 : index
      %33 = vector.load %arg7[%c0_8, %c0_9, %c0_10] : memref<1x4x256xf32, #tpu.memory_space<vmem>>, vector<1x4x256xf32>
      %34 = vector.shape_cast %33 : vector<1x4x256xf32> to vector<4x256xf32>
      %c0_11 = arith.constant 0 : index
      %c0_12 = arith.constant 0 : index
      %35 = vector.load %arg9[%c0_11, %c0_12] : memref<4x128xf32, #tpu.memory_space<vmem>>, vector<4x128xf32>
      %cst = arith.constant 0.000000e+00 : f32
      %36 = vector.broadcast %cst : f32 to vector<1x128xf32>
      %37 = arith.addf %22, %36 : vector<1x128xf32>
      %cst_13 = arith.constant 0.000000e+00 : f32
      %38 = vector.broadcast %cst_13 : f32 to vector<1x128xf32>
      %39 = arith.addf %23, %38 : vector<1x128xf32>
      %cst_14 = arith.constant 1.000000e+00 : f32
      %40 = vector.broadcast %cst_14 : f32 to vector<1x128xf32>
      %41 = arith.subf %40, %24 : vector<1x128xf32>
      %cst_15 = arith.constant 1.000000e+00 : f32
      %42 = vector.broadcast %cst_15 : f32 to vector<1x128xf32>
      %43 = arith.subf %42, %25 : vector<1x128xf32>
      %44 = arith.mulf %41, %43 : vector<1x128xf32>
      %cst_16 = arith.constant 0.000000e+00 : f32
      %45 = vector.broadcast %cst_16 : f32 to vector<1x128xf32>
      %46 = arith.cmpf oge, %37, %45 : vector<1x128xf32>
      %cst_17 = arith.constant 1.500000e+01 : f32
      %47 = vector.broadcast %cst_17 : f32 to vector<1x128xf32>
      %48 = arith.cmpf ole, %37, %47 : vector<1x128xf32>
      %49 = arith.andi %46, %48 : vector<1x128xi1>
      %cst_18 = arith.constant 0.000000e+00 : f32
      %50 = vector.broadcast %cst_18 : f32 to vector<1x128xf32>
      %51 = arith.cmpf oge, %39, %50 : vector<1x128xf32>
      %52 = arith.andi %49, %51 : vector<1x128xi1>
      %cst_19 = arith.constant 1.500000e+01 : f32
      %53 = vector.broadcast %cst_19 : f32 to vector<1x128xf32>
      %54 = arith.cmpf ole, %39, %53 : vector<1x128xf32>
      %55 = arith.andi %52, %54 : vector<1x128xi1>
      %cst_20 = arith.constant 0.000000e+00 : f32
      %56 = vector.broadcast %cst_20 : f32 to vector<1x128xf32>
      %57 = arith.select %55, %44, %56 : vector<1x128xi1>, vector<1x128xf32>
      %cst_21 = arith.constant 0.000000e+00 : f32
      %cst_22 = arith.constant 1.500000e+01 : f32
      %58 = vector.broadcast %cst_21 : f32 to vector<1x128xf32>
      %59 = arith.maximumf %58, %37 : vector<1x128xf32>
      %60 = vector.broadcast %cst_22 : f32 to vector<1x128xf32>
      %61 = arith.minimumf %60, %59 : vector<1x128xf32>
      %cst_23 = arith.constant 1.600000e+01 : f32
      %62 = vector.broadcast %cst_23 : f32 to vector<1x128xf32>
      %63 = arith.mulf %61, %62 : vector<1x128xf32>
      %cst_24 = arith.constant 0.000000e+00 : f32
      %cst_25 = arith.constant 1.500000e+01 : f32
      %64 = vector.broadcast %cst_24 : f32 to vector<1x128xf32>
      %65 = arith.maximumf %64, %39 : vector<1x128xf32>
      %66 = vector.broadcast %cst_25 : f32 to vector<1x128xf32>
      %67 = arith.minimumf %66, %65 : vector<1x128xf32>
      %68 = arith.addf %63, %67 : vector<1x128xf32>
      %69 = arith.fptosi %68 : vector<1x128xf32> to vector<1x128xi32>
      %70 = vector.broadcast %32 : vector<256x1xi32> to vector<256x128xi32>
      %71 = vector.broadcast %69 : vector<1x128xi32> to vector<256x128xi32>
      %72 = arith.cmpi eq, %70, %71 : vector<256x128xi32>
      %73 = arith.extui %72 : vector<256x128xi1> to vector<256x128xi32>
      %74 = arith.sitofp %73 : vector<256x128xi32> to vector<256x128xf32>
      %cst_26 = arith.constant dense<0.000000e+00> : vector<4x128xf32>
      %75 = tpu.matmul %34, %74, %cst_26 {dimension_numbers = #tpu.dot_dimension_numbers<[1], [0], [0], [1], [0, 0, 1, 1], [], []>} : vector<4x256xf32>, vector<256x128xf32>, vector<4x128xf32> -> vector<4x128xf32>
      %76 = vector.broadcast %57 : vector<1x128xf32> to vector<4x128xf32>
      %77 = arith.mulf %76, %75 : vector<4x128xf32>
      %cst_27 = arith.constant 0.000000e+00 : f32
      %78 = vector.broadcast %cst_27 : f32 to vector<1x128xf32>
      %79 = arith.addf %22, %78 : vector<1x128xf32>
      %cst_28 = arith.constant 1.000000e+00 : f32
      %80 = vector.broadcast %cst_28 : f32 to vector<1x128xf32>
      %81 = arith.addf %23, %80 : vector<1x128xf32>
      %cst_29 = arith.constant 1.000000e+00 : f32
      %82 = vector.broadcast %cst_29 : f32 to vector<1x128xf32>
      %83 = arith.subf %82, %24 : vector<1x128xf32>
      %84 = arith.mulf %83, %25 : vector<1x128xf32>
      %cst_30 = arith.constant 0.000000e+00 : f32
      %85 = vector.broadcast %cst_30 : f32 to vector<1x128xf32>
      %86 = arith.cmpf oge, %79, %85 : vector<1x128xf32>
      %cst_31 = arith.constant 1.500000e+01 : f32
      %87 = vector.broadcast %cst_31 : f32 to vector<1x128xf32>
      %88 = arith.cmpf ole, %79, %87 : vector<1x128xf32>
      %89 = arith.andi %86, %88 : vector<1x128xi1>
      %cst_32 = arith.constant 0.000000e+00 : f32
      %90 = vector.broadcast %cst_32 : f32 to vector<1x128xf32>
      %91 = arith.cmpf oge, %81, %90 : vector<1x128xf32>
      %92 = arith.andi %89, %91 : vector<1x128xi1>
      %cst_33 = arith.constant 1.500000e+01 : f32
      %93 = vector.broadcast %cst_33 : f32 to vector<1x128xf32>
      %94 = arith.cmpf ole, %81, %93 : vector<1x128xf32>
      %95 = arith.andi %92, %94 : vector<1x128xi1>
      %cst_34 = arith.constant 0.000000e+00 : f32
      %96 = vector.broadcast %cst_34 : f32 to vector<1x128xf32>
      %97 = arith.select %95, %84, %96 : vector<1x128xi1>, vector<1x128xf32>
      %cst_35 = arith.constant 0.000000e+00 : f32
      %cst_36 = arith.constant 1.500000e+01 : f32
      %98 = vector.broadcast %cst_35 : f32 to vector<1x128xf32>
      %99 = arith.maximumf %98, %79 : vector<1x128xf32>
      %100 = vector.broadcast %cst_36 : f32 to vector<1x128xf32>
      %101 = arith.minimumf %100, %99 : vector<1x128xf32>
      %cst_37 = arith.constant 1.600000e+01 : f32
      %102 = vector.broadcast %cst_37 : f32 to vector<1x128xf32>
      %103 = arith.mulf %101, %102 : vector<1x128xf32>
      %cst_38 = arith.constant 0.000000e+00 : f32
      %cst_39 = arith.constant 1.500000e+01 : f32
      %104 = vector.broadcast %cst_38 : f32 to vector<1x128xf32>
      %105 = arith.maximumf %104, %81 : vector<1x128xf32>
      %106 = vector.broadcast %cst_39 : f32 to vector<1x128xf32>
      %107 = arith.minimumf %106, %105 : vector<1x128xf32>
      %108 = arith.addf %103, %107 : vector<1x128xf32>
      %109 = arith.fptosi %108 : vector<1x128xf32> to vector<1x128xi32>
      %110 = vector.broadcast %32 : vector<256x1xi32> to vector<256x128xi32>
      %111 = vector.broadcast %109 : vector<1x128xi32> to vector<256x128xi32>
      %112 = arith.cmpi eq, %110, %111 : vector<256x128xi32>
      %113 = arith.extui %112 : vector<256x128xi1> to vector<256x128xi32>
      %114 = arith.sitofp %113 : vector<256x128xi32> to vector<256x128xf32>
      %cst_40 = arith.constant dense<0.000000e+00> : vector<4x128xf32>
      %115 = tpu.matmul %34, %114, %cst_40 {dimension_numbers = #tpu.dot_dimension_numbers<[1], [0], [0], [1], [0, 0, 1, 1], [], []>} : vector<4x256xf32>, vector<256x128xf32>, vector<4x128xf32> -> vector<4x128xf32>
      %116 = vector.broadcast %97 : vector<1x128xf32> to vector<4x128xf32>
      %117 = arith.mulf %116, %115 : vector<4x128xf32>
      %118 = arith.addf %77, %117 : vector<4x128xf32>
      %cst_41 = arith.constant 1.000000e+00 : f32
      %119 = vector.broadcast %cst_41 : f32 to vector<1x128xf32>
      %120 = arith.addf %22, %119 : vector<1x128xf32>
      %cst_42 = arith.constant 0.000000e+00 : f32
      %121 = vector.broadcast %cst_42 : f32 to vector<1x128xf32>
      %122 = arith.addf %23, %121 : vector<1x128xf32>
      %cst_43 = arith.constant 1.000000e+00 : f32
      %123 = vector.broadcast %cst_43 : f32 to vector<1x128xf32>
      %124 = arith.subf %123, %25 : vector<1x128xf32>
      %125 = arith.mulf %24, %124 : vector<1x128xf32>
      %cst_44 = arith.constant 0.000000e+00 : f32
      %126 = vector.broadcast %cst_44 : f32 to vector<1x128xf32>
      %127 = arith.cmpf oge, %120, %126 : vector<1x128xf32>
      %cst_45 = arith.constant 1.500000e+01 : f32
      %128 = vector.broadcast %cst_45 : f32 to vector<1x128xf32>
      %129 = arith.cmpf ole, %120, %128 : vector<1x128xf32>
      %130 = arith.andi %127, %129 : vector<1x128xi1>
      %cst_46 = arith.constant 0.000000e+00 : f32
      %131 = vector.broadcast %cst_46 : f32 to vector<1x128xf32>
      %132 = arith.cmpf oge, %122, %131 : vector<1x128xf32>
      %133 = arith.andi %130, %132 : vector<1x128xi1>
      %cst_47 = arith.constant 1.500000e+01 : f32
      %134 = vector.broadcast %cst_47 : f32 to vector<1x128xf32>
      %135 = arith.cmpf ole, %122, %134 : vector<1x128xf32>
      %136 = arith.andi %133, %135 : vector<1x128xi1>
      %cst_48 = arith.constant 0.000000e+00 : f32
      %137 = vector.broadcast %cst_48 : f32 to vector<1x128xf32>
      %138 = arith.select %136, %125, %137 : vector<1x128xi1>, vector<1x128xf32>
      %cst_49 = arith.constant 0.000000e+00 : f32
      %cst_50 = arith.constant 1.500000e+01 : f32
      %139 = vector.broadcast %cst_49 : f32 to vector<1x128xf32>
      %140 = arith.maximumf %139, %120 : vector<1x128xf32>
      %141 = vector.broadcast %cst_50 : f32 to vector<1x128xf32>
      %142 = arith.minimumf %141, %140 : vector<1x128xf32>
      %cst_51 = arith.constant 1.600000e+01 : f32
      %143 = vector.broadcast %cst_51 : f32 to vector<1x128xf32>
      %144 = arith.mulf %142, %143 : vector<1x128xf32>
      %cst_52 = arith.constant 0.000000e+00 : f32
      %cst_53 = arith.constant 1.500000e+01 : f32
      %145 = vector.broadcast %cst_52 : f32 to vector<1x128xf32>
      %146 = arith.maximumf %145, %122 : vector<1x128xf32>
      %147 = vector.broadcast %cst_53 : f32 to vector<1x128xf32>
      %148 = arith.minimumf %147, %146 : vector<1x128xf32>
      %149 = arith.addf %144, %148 : vector<1x128xf32>
      %150 = arith.fptosi %149 : vector<1x128xf32> to vector<1x128xi32>
      %151 = vector.broadcast %32 : vector<256x1xi32> to vector<256x128xi32>
      %152 = vector.broadcast %150 : vector<1x128xi32> to vector<256x128xi32>
      %153 = arith.cmpi eq, %151, %152 : vector<256x128xi32>
      %154 = arith.extui %153 : vector<256x128xi1> to vector<256x128xi32>
      %155 = arith.sitofp %154 : vector<256x128xi32> to vector<256x128xf32>
      %cst_54 = arith.constant dense<0.000000e+00> : vector<4x128xf32>
      %156 = tpu.matmul %34, %155, %cst_54 {dimension_numbers = #tpu.dot_dimension_numbers<[1], [0], [0], [1], [0, 0, 1, 1], [], []>} : vector<4x256xf32>, vector<256x128xf32>, vector<4x128xf32> -> vector<4x128xf32>
      %157 = vector.broadcast %138 : vector<1x128xf32> to vector<4x128xf32>
      %158 = arith.mulf %157, %156 : vector<4x128xf32>
      %159 = arith.addf %118, %158 : vector<4x128xf32>
      %cst_55 = arith.constant 1.000000e+00 : f32
      %160 = vector.broadcast %cst_55 : f32 to vector<1x128xf32>
      %161 = arith.addf %22, %160 : vector<1x128xf32>
      %cst_56 = arith.constant 1.000000e+00 : f32
      %162 = vector.broadcast %cst_56 : f32 to vector<1x128xf32>
      %163 = arith.addf %23, %162 : vector<1x128xf32>
      %164 = arith.mulf %24, %25 : vector<1x128xf32>
      %cst_57 = arith.constant 0.000000e+00 : f32
      %165 = vector.broadcast %cst_57 : f32 to vector<1x128xf32>
      %166 = arith.cmpf oge, %161, %165 : vector<1x128xf32>
      %cst_58 = arith.constant 1.500000e+01 : f32
      %167 = vector.broadcast %cst_58 : f32 to vector<1x128xf32>
      %168 = arith.cmpf ole, %161, %167 : vector<1x128xf32>
      %169 = arith.andi %166, %168 : vector<1x128xi1>
      %cst_59 = arith.constant 0.000000e+00 : f32
      %170 = vector.broadcast %cst_59 : f32 to vector<1x128xf32>
      %171 = arith.cmpf oge, %163, %170 : vector<1x128xf32>
      %172 = arith.andi %169, %171 : vector<1x128xi1>
      %cst_60 = arith.constant 1.500000e+01 : f32
      %173 = vector.broadcast %cst_60 : f32 to vector<1x128xf32>
      %174 = arith.cmpf ole, %163, %173 : vector<1x128xf32>
      %175 = arith.andi %172, %174 : vector<1x128xi1>
      %cst_61 = arith.constant 0.000000e+00 : f32
      %176 = vector.broadcast %cst_61 : f32 to vector<1x128xf32>
      %177 = arith.select %175, %164, %176 : vector<1x128xi1>, vector<1x128xf32>
      %cst_62 = arith.constant 0.000000e+00 : f32
      %cst_63 = arith.constant 1.500000e+01 : f32
      %178 = vector.broadcast %cst_62 : f32 to vector<1x128xf32>
      %179 = arith.maximumf %178, %161 : vector<1x128xf32>
      %180 = vector.broadcast %cst_63 : f32 to vector<1x128xf32>
      %181 = arith.minimumf %180, %179 : vector<1x128xf32>
      %cst_64 = arith.constant 1.600000e+01 : f32
      %182 = vector.broadcast %cst_64 : f32 to vector<1x128xf32>
      %183 = arith.mulf %181, %182 : vector<1x128xf32>
      %cst_65 = arith.constant 0.000000e+00 : f32
      %cst_66 = arith.constant 1.500000e+01 : f32
      %184 = vector.broadcast %cst_65 : f32 to vector<1x128xf32>
      %185 = arith.maximumf %184, %163 : vector<1x128xf32>
      %186 = vector.broadcast %cst_66 : f32 to vector<1x128xf32>
      %187 = arith.minimumf %186, %185 : vector<1x128xf32>
      %188 = arith.addf %183, %187 : vector<1x128xf32>
      %189 = arith.fptosi %188 : vector<1x128xf32> to vector<1x128xi32>
      %190 = vector.broadcast %32 : vector<256x1xi32> to vector<256x128xi32>
      %191 = vector.broadcast %189 : vector<1x128xi32> to vector<256x128xi32>
      %192 = arith.cmpi eq, %190, %191 : vector<256x128xi32>
      %193 = arith.extui %192 : vector<256x128xi1> to vector<256x128xi32>
      %194 = arith.sitofp %193 : vector<256x128xi32> to vector<256x128xf32>
      %cst_67 = arith.constant dense<0.000000e+00> : vector<4x128xf32>
      %195 = tpu.matmul %34, %194, %cst_67 {dimension_numbers = #tpu.dot_dimension_numbers<[1], [0], [0], [1], [0, 0, 1, 1], [], []>} : vector<4x256xf32>, vector<256x128xf32>, vector<4x128xf32> -> vector<4x128xf32>
      %196 = vector.broadcast %177 : vector<1x128xf32> to vector<4x128xf32>
      %197 = arith.mulf %196, %195 : vector<4x128xf32>
      %198 = arith.addf %159, %197 : vector<4x128xf32>
      %199 = arith.addf %35, %198 : vector<4x128xf32>
      %c0_68 = arith.constant 0 : index
      %c0_69 = arith.constant 0 : index
      %200 = vector.load %arg9[%c0_68, %c0_69] : memref<4x128xf32, #tpu.memory_space<vmem>>, vector<4x128xf32>
      tpu.vector_store %arg9[%c0_68, %c0_69], %199 {strides = array<i32>} : memref<4x128xf32, #tpu.memory_space<vmem>>, vector<4x128xf32>,
    } else {
    }
    %c0_i32_2 = arith.constant 0 : i32
    %10 = arith.cmpi eq, %arg2, %c0_i32_2 : i32
    %11 = arith.extui %10 : i1 to i32
    %c0_i32_3 = arith.constant 0 : i32
    %12 = arith.cmpi ne, %11, %c0_i32_3 : i32
    scf.if %12 {
      %c0 = arith.constant 0 : index
      %c0_4 = arith.constant 0 : index
      %13 = vector.load %arg9[%c0, %c0_4] : memref<4x128xf32, #tpu.memory_space<vmem>>, vector<4x128xf32>
      %c0_5 = arith.constant 0 : index
      %c0_6 = arith.constant 0 : index
      %c0_7 = arith.constant 0 : index
      %14 = vector.load %arg8[%c0_5, %c0_6, %c0_7] : memref<1x4x128xf32, #tpu.memory_space<vmem>>, vector<1x4x128xf32>
      %15 = vector.shape_cast %14 : vector<1x4x128xf32> to vector<4x128xf32>
      %16 = vector.shape_cast %13 : vector<4x128xf32> to vector<1x4x128xf32>
      tpu.vector_store %arg8[%c0_5, %c0_6, %c0_7], %16 {strides = array<i32>} : memref<1x4x128xf32, #tpu.memory_space<vmem>>, vector<1x4x128xf32>,
    } else {
    }
    return
  }
  func.func @transform_0(%arg0: i32, %arg1: i32, %arg2: i32, %arg3: memref<4xi32, #tpu.memory_space<smem>>, %arg4: memref<4xi32, #tpu.memory_space<smem>>) -> (i32, i32) {
    %c0_i32 = arith.constant 0 : i32
    %c0_i32_0 = arith.constant 0 : i32
    return %c0_i32, %arg1 : i32, i32
  }
  func.func @transform_1(%arg0: i32, %arg1: i32, %arg2: i32, %arg3: memref<4xi32, #tpu.memory_space<smem>>, %arg4: memref<4xi32, #tpu.memory_space<smem>>) -> (i32, i32, i32) {
    %c0_i32 = arith.constant 0 : i32
    %c0_i32_0 = arith.constant 0 : i32
    return %arg0, %c0_i32, %arg1 : i32, i32, i32
  }
  func.func @transform_2(%arg0: i32, %arg1: i32, %arg2: i32, %arg3: memref<4xi32, #tpu.memory_space<smem>>, %arg4: memref<4xi32, #tpu.memory_space<smem>>) -> (i32, i32, i32) {
    %c2_i32 = arith.constant 2 : i32
    %0 = arith.muli %arg0, %c2_i32 : i32
    %1 = arith.addi %0, %arg1 : i32
    %2 = arith.index_cast %1 : i32 to index
    %3 = memref.load %arg3[%2] : memref<4xi32, #tpu.memory_space<smem>>
    %4 = arith.addi %3, %arg2 : i32
    %c0_i32 = arith.constant 0 : i32
    %c0_i32_0 = arith.constant 0 : i32
    return %arg0, %c0_i32, %4 : i32, i32, i32
  }
  func.func @transform_3(%arg0: i32, %arg1: i32, %arg2: i32, %arg3: memref<4xi32, #tpu.memory_space<smem>>, %arg4: memref<4xi32, #tpu.memory_space<smem>>) -> (i32, i32, i32) {
    %c0_i32 = arith.constant 0 : i32
    %c0_i32_0 = arith.constant 0 : i32
    return %arg0, %c0_i32, %arg1 : i32, i32, i32
  }
}

</mosaic_0001>

<llo_original>
// kernel: tpu_custom_call.1
$region0: #{tpu_custom_call.1}
  #allocation0 [shape = 'u32[]', space=smem, size = 0x4, offset = 0x4, fixed_abs, tag = 'smem constant byte address 0x4 - core index']
  #allocation1 [shape = 'u32[72,128]{1,0:T(1,128)}', space=vmem, size = 0x9000, scoped, tag = 'internal scratch']
  #allocation2 [shape = 'f32[4,128]{1,0:T(4,128)}', space=vmem, size = 0x800, scoped, tag = 'scratch operand']
  #allocation3 [shape = 's32[1]{0}', space=sflag, size = 0x4, scoped, tag = 'scoped memory for tpu_custom_call.1']
  #allocation4 [shape = 'u8[512]{0}', space=smem, size = 0x200, scoped, tag = 'prefetched SMEM operand 0']
  #allocation5 [shape = 'u8[512]{0}', space=smem, size = 0x200, scoped, tag = 'prefetched SMEM operand 1']
  %s0 = inlined_call_operand.hbm [shape: s32[4], index: 0, kind: input, shape index: {}]
  %s1 = inlined_call_operand.hbm [shape: s32[4], index: 1, kind: input, shape index: {}]
  %s2 = inlined_call_operand.hbm [shape: f32[2,256], index: 2, kind: input, shape index: {}]
  %s3 = inlined_call_operand.hbm [shape: f32[2,2,256], index: 3, kind: input, shape index: {}]
  %s4 = inlined_call_operand.hbm [shape: f32[2,4,256], index: 4, kind: input, shape index: {}]
  %s5 = inlined_call_operand.hbm [shape: f32[2,4,256], index: 5, kind: output, shape index: {}]
  %s6 = sld [smem:[#allocation0]]
  $region69: #{tpu_custom_call.1} parent=0
    _
  %s8 = ssub.s32 1, %s6
  %s9 = scalar_select 0, %s8, %s6
  %s11 = sshll.u32 %s0, 4
  %s12 = int_to_ptr.hbm [resolvable:$true] %s11
  %14 = dma.hbm_to_smem %s12, 16, [#allocation4], [#allocation3]
  %s16 = sshll.u32 %s1, 4
  %s17 = int_to_ptr.hbm [resolvable:$true] %s16
  %19 = dma.hbm_to_smem %s17, 16, [#allocation5], [#allocation3]
  %21 = dma.done [#allocation3], 32
  %22 = sfence
  $region1: #{tpu_custom_call.1} parent=0
    #allocation6 [shape = 'u8[2048]{0}', space=vmem, size = 0x800, scoped, tag = 'input window, operand 2']
    #allocation7 [shape = 's32[2]{0}', space=sflag, size = 0x8, scoped, tag = 'scoped memory for tpu_custom_call.1']
    #allocation8 [shape = 's32[2]{0}', space=sflag, size = 0x8, scoped, tag = 'scoped memory for tpu_custom_call.1']
    #allocation9 [shape = 'u8[2048]{0}', space=vmem, size = 0x800, scoped, tag = 'input window, operand 3']
    #allocation10 [shape = 's32[2]{0}', space=sflag, size = 0x8, scoped, tag = 'scoped memory for tpu_custom_call.1']
    #allocation11 [shape = 'u8[8192]{0}', space=vmem, size = 0x2000, scoped, tag = 'input window, operand 4']
    #allocation12 [shape = 'u8[4096]{0}', space=vmem, size = 0x1000, scoped, tag = 'output window, operand 0']
    %23 = vsyncpa [#allocation7], 0
    %s24 = scalar_lea.sflag [#allocation7], 1
    %25 = vsyncpa %s24, 0
    %26 = vsyncpa [#allocation10], 0
    %s27 = scalar_lea.sflag [#allocation10], 1
    %28 = vsyncpa %s27, 0
    %29 = vsyncpa [#allocation8], 0
    %s30 = scalar_lea.sflag [#allocation8], 1
    %31 = vsyncpa %s30, 0
    loop: start=0, step=1, limit=6
    $region2: #{tpu_custom_call.1} parent=1 // loop_pre_header
      _
    $region3: #{tpu_custom_call.1} parent=1 // loop_header
      %s33 = sphi 0, %s37
      %p34 = scmp.ge.s32.totalorder %s33, 6
      %s40 = sphi 0, %s59
      %s41 = sphi 0, %s55
      %s42 = sphi 0, %s51
      %s43 = sphi 0, %s40
      %s44 = sphi 0, %s41
      %s45 = sphi 0, %s42
      %s46 = sphi 0, %s43
      %s47 = sphi 0, %s44
      %s48 = sphi 0, %s45
      %s62 = sphi 0, %s64
      %s65 = sphi 0, %s62
      %s66 = sphi 0, %s65
      %s82 = sphi 0, %s66
      %s90 = sphi 0, %s92
      %s93 = sphi 0, %s90
      %s94 = sphi 0, %s93
      %s110 = sphi 0, %s94
      %s126 = sphi 0, %s128
      %s129 = sphi 0, %s126
      %s130 = sphi 0, %s129
      %s146 = sphi 0, %s130
      %s154 = sphi 0, %s156
      %s157 = sphi 0, %s154
      %s158 = sphi 0, %s157
      %s174 = sphi 0, %s158
    $region4: #{tpu_custom_call.1} parent=1 // loop_header_branch
      %36 = sbr.rel (%p34) target = $region8
    $region5: #{tpu_custom_call.1} parent=1 // loop_body
      %s38 = ssub.s32 %s33, 1
      %s39 = ssub.s32 %s33, 2
      %s49 = sadd.s32 1, %s42
      %p50 = scmp.ge.s32.totalorder %s49, 1
      %s51 = scalar_select %p50, 0, %s49
      %s52 = sadd.s32 1, %s41
      %s53 = scalar_select %p50, %s52, %s41
      %p54 = scmp.ge.s32.totalorder %s53, 2
      %s55 = scalar_select %p54, 0, %s53
      %s56 = sadd.s32 1, %s40
      %s57 = scalar_select %p54, %s56, %s40
      %p58 = scmp.ge.s32.totalorder %s57, 2
      %s59 = scalar_select %p58, 0, %s57
      %s60 = ssub.s32 %s41, %s55
      %p61 = scmp.eq.s32.totalorder %s60, 0
      %s63 = sadd.s32 %s62, 1
      %s64 = scalar_select %p61, %s62, %s63
      %p67 = pneg %p61
      %p68 = scmp.eq.s32.totalorder %s33, 3
      %p69 = por %p67, %p68
      %p70 = scmp.ne.s32.totalorder %s62, %s65
      %p71 = scmp.eq.s32.totalorder %s33, 0
      %p72 = por %p70, %p71
      %p73 = scmp.ne.s32.totalorder %s62, %s65
      %p74 = scmp.eq.s32.totalorder %s38, 3
      %p75 = por %p73, %p74
      %p76 = scmp.ne.s32.totalorder %s65, %s66
      %p77 = scmp.eq.s32.totalorder %s38, 0
      %p78 = por %p76, %p77
      %p79 = scmp.ne.s32.totalorder %s65, %s66
      %p80 = scmp.eq.s32.totalorder %s39, 3
      %p81 = por %p79, %p80
      %p83 = scmp.ne.s32.totalorder %s66, %s82
      %p84 = scmp.eq.s32.totalorder %s39, 0
      %p85 = por %p83, %p84
      %s86 = ssub.s32 %s40, %s59
      %s87 = ssub.s32 %s41, %s55
      %s88 = sor.u32 %s86, %s87
      %p89 = scmp.eq.s32.totalorder %s88, 0
      %s91 = sadd.s32 %s90, 1
      %s92 = scalar_select %p89, %s90, %s91
      %p95 = pneg %p89
      %p96 = scmp.eq.s32.totalorder %s33, 3
      %p97 = por %p95, %p96
      %p98 = scmp.ne.s32.totalorder %s90, %s93
      %p99 = scmp.eq.s32.totalorder %s33, 0
      %p100 = por %p98, %p99
      %p101 = scmp.ne.s32.totalorder %s90, %s93
      %p102 = scmp.eq.s32.totalorder %s38, 3
      %p103 = por %p101, %p102
      %p104 = scmp.ne.s32.totalorder %s93, %s94
      %p105 = scmp.eq.s32.totalorder %s38, 0
      %p106 = por %p104, %p105
      %p107 = scmp.ne.s32.totalorder %s93, %s94
      %p108 = scmp.eq.s32.totalorder %s39, 3
      %p109 = por %p107, %p108
      %p111 = scmp.ne.s32.totalorder %s94, %s110
      %p112 = scmp.eq.s32.totalorder %s39, 0
      %p113 = por %p111, %p112
      %s114 = smul.u32 %s40, 2
      %s115 = sadd.s32 %s114, %s41
      %s116 = sld [smem:[#allocation4 + %s115]]
      %s117 = sadd.s32 %s116, %s42
      %s118 = smul.u32 %s59, 2
      %s119 = sadd.s32 %s118, %s55
      %s120 = sld [smem:[#allocation4 + %s119]]
      %s121 = sadd.s32 %s120, %s51
      %s122 = ssub.s32 %s40, %s59
      %s123 = ssub.s32 %s117, %s121
      %s124 = sor.u32 %s122, %s123
      %p125 = scmp.eq.s32.totalorder %s124, 0
      %s127 = sadd.s32 %s126, 1
      %s128 = scalar_select %p125, %s126, %s127
      %p131 = pneg %p125
      %p132 = scmp.eq.s32.totalorder %s33, 3
      %p133 = por %p131, %p132
      %p134 = scmp.ne.s32.totalorder %s126, %s129
      %p135 = scmp.eq.s32.totalorder %s33, 0
      %p136 = por %p134, %p135
      %p137 = scmp.ne.s32.totalorder %s126, %s129
      %p138 = scmp.eq.s32.totalorder %s38, 3
      %p139 = por %p137, %p138
      %p140 = scmp.ne.s32.totalorder %s129, %s130
      %p141 = scmp.eq.s32.totalorder %s38, 0
      %p142 = por %p140, %p141
      %p143 = scmp.ne.s32.totalorder %s129, %s130
      %p144 = scmp.eq.s32.totalorder %s39, 3
      %p145 = por %p143, %p144
      %p147 = scmp.ne.s32.totalorder %s130, %s146
      %p148 = scmp.eq.s32.totalorder %s39, 0
      %p149 = por %p147, %p148
      %s150 = ssub.s32 %s40, %s59
      %s151 = ssub.s32 %s41, %s55
      %s152 = sor.u32 %s150, %s151
      %p153 = scmp.eq.s32.totalorder %s152, 0
      %s155 = sadd.s32 %s154, 1
      %s156 = scalar_select %p153, %s154, %s155
      %p159 = pneg %p153
      %p160 = scmp.eq.s32.totalorder %s33, 3
      %p161 = por %p159, %p160
      %p162 = scmp.ne.s32.totalorder %s154, %s157
      %p163 = scmp.eq.s32.totalorder %s33, 0
      %p164 = por %p162, %p163
      %p165 = scmp.ne.s32.totalorder %s154, %s157
      %p166 = scmp.eq.s32.totalorder %s38, 3
      %p167 = por %p165, %p166
      %p168 = scmp.ne.s32.totalorder %s157, %s158
      %p169 = scmp.eq.s32.totalorder %s38, 0
      %p170 = por %p168, %p169
      %p171 = scmp.ne.s32.totalorder %s157, %s158
      %p172 = scmp.eq.s32.totalorder %s39, 3
      %p173 = por %p171, %p172
      %p175 = scmp.ne.s32.totalorder %s158, %s174
      %p176 = scmp.eq.s32.totalorder %s39, 0
      %p177 = por %p175, %p176
      %p178 = scmp.le.s32.totalorder 1, %s33
      %p179 = scmp.lt.s32.totalorder %s33, 5
      %p180 = pnand %p178, %p179
      %p181 = pneg %p180
      // Predicated region
      $region9: #{tpu_custom_call.1} parent=5 // pred_check
        _
      $region10: #{tpu_custom_call.1} parent=5 // pred_check_branch
        %183 = sbr.rel (%p180) target = $region12
      $region11: #{tpu_custom_call.1} parent=5 // pred_region
        %s184 = ssub.s32 %s33, 1
      $region12: #{tpu_custom_call.1} parent=5 // pred_fallthru
        _
      %p185 = scmp.lt.s32.totalorder %s33, 4
      // Predicated region
      $region13: #{tpu_custom_call.1} parent=5 // pred_check
        %p186 = pneg %p185
      $region14: #{tpu_custom_call.1} parent=5 // pred_check_branch
        %188 = sbr.rel (%p186) target = $region16
      $region15: #{tpu_custom_call.1} parent=5 // pred_region
        // Predicated region
        $region17: #{tpu_custom_call.1} parent=15 // pred_check
          %p189 = pneg %p72
        $region18: #{tpu_custom_call.1} parent=15 // pred_check_branch
          %191 = sbr.rel (%p189) target = $region20
        $region19: #{tpu_custom_call.1} parent=15 // pred_region
          %s192 = sand.u32 %s62, 1
          %s193 = scalar_lea.sflag [#allocation7], %s192
          %s194 = sand.u32 %s62, 1
          %s195 = smul.addr %s194, 2
          %s196 = scalar_lea.vmem [#allocation6], %s195
          %198 = vsyncadd %s193, 0
          %s199 = smul.addr %s41, 2
          %s200 = scalar_lea.hbm %s2, %s199
          %s202 = sshll.u32 %s200, 4
          %s203 = int_to_ptr.hbm [resolvable:$true] %s202
          %s204 = sshll.u32 %s196, 4
          %s205 = int_to_ptr.vmem [resolvable:$true] %s204
          %207 = dma.hbm_to_vmem [thread:$0]  %s203, 32, %s205, %s193
        $region20: #{tpu_custom_call.1} parent=15 // pred_fallthru
          _
        // Predicated region
        $region21: #{tpu_custom_call.1} parent=15 // pred_check
          %p208 = pneg %p100
        $region22: #{tpu_custom_call.1} parent=15 // pred_check_branch
          %210 = sbr.rel (%p208) target = $region24
        $region23: #{tpu_custom_call.1} parent=15 // pred_region
          %s211 = sand.u32 %s33, 1
          %s212 = scalar_lea.sflag [#allocation10], %s211
          %s213 = sand.u32 %s90, 1
          %s214 = smul.addr %s213, 2
          %s215 = scalar_lea.vmem [#allocation9], %s214
          %217 = vsyncadd %s212, 0
          %s218 = smul.addr %s40, 2
          %s219 = sadd.s32 %s41, %s218
          %s220 = smul.addr %s219, 2
          %s221 = scalar_lea.hbm %s3, %s220
          %s223 = sshll.u32 %s221, 4
          %s224 = int_to_ptr.hbm [resolvable:$true] %s223
          %s225 = sshll.u32 %s215, 4
          %s226 = int_to_ptr.vmem [resolvable:$true] %s225
          %228 = dma.hbm_to_vmem [thread:$0]  %s224, 32, %s226, %s212
        $region24: #{tpu_custom_call.1} parent=15 // pred_fallthru
          _
        // Predicated region
        $region25: #{tpu_custom_call.1} parent=15 // pred_check
          %p229 = pneg %p136
        $region26: #{tpu_custom_call.1} parent=15 // pred_check_branch
          %231 = sbr.rel (%p229) target = $region28
        $region27: #{tpu_custom_call.1} parent=15 // pred_region
          %s232 = sand.u32 %s33, 1
          %s233 = scalar_lea.sflag [#allocation10], %s232
          %s234 = sand.u32 %s126, 1
          %s235 = smul.addr %s234, 8
          %s236 = scalar_lea.vmem [#allocation11], %s235
          %s237 = smul.u32 %s40, 2
          %s238 = sadd.s32 %s237, %s41
          %s239 = sld [smem:[#allocation4 + %s238]]
          %s240 = sadd.s32 %s239, %s42
          %s241 = smul.u32 2, %s240
          %243 = vsyncadd %s233, 0
          %s244 = smul.addr %s40, 2
          %s245 = sadd.s32 %s241, %s244
          %s246 = smul.addr %s245, 4
          %s247 = scalar_lea.hbm %s4, %s246
          %s249 = sshll.u32 %s247, 4
          %s250 = int_to_ptr.hbm [resolvable:$true] %s249
          %s251 = sshll.u32 %s236, 4
          %s252 = int_to_ptr.vmem [resolvable:$true] %s251
          %254 = dma.hbm_to_vmem [thread:$0]  %s250, 128, %s252, %s233
        $region28: #{tpu_custom_call.1} parent=15 // pred_fallthru
          _
      $region16: #{tpu_custom_call.1} parent=5 // pred_fallthru
        _
      %p255 = scmp.le.s32.totalorder 1, %s33
      %p256 = scmp.lt.s32.totalorder %s33, 5
      %p257 = pnand %p255, %p256
      %p258 = pneg %p257
      // Predicated region
      $region29: #{tpu_custom_call.1} parent=5 // pred_check
        _
      $region30: #{tpu_custom_call.1} parent=5 // pred_check_branch
        %260 = sbr.rel (%p257) target = $region32
      $region31: #{tpu_custom_call.1} parent=5 // pred_region
        %s261 = ssub.s32 %s33, 1
        %s262 = sand.u32 %s65, 1
        %s263 = scalar_lea.sflag [#allocation7], %s262
        %s264 = sand.u32 %s65, 1
        %s265 = smul.addr %s264, 2
        %s266 = scalar_lea.vmem [#allocation6], %s265
        // Predicated region
        $region33: #{tpu_custom_call.1} parent=31 // pred_check
          %p267 = pneg %p78
        $region34: #{tpu_custom_call.1} parent=31 // pred_check_branch
          %269 = sbr.rel (%p267) target = $region36
        $region35: #{tpu_custom_call.1} parent=31 // pred_region
          %271 = dma.done %s263, 32
        $region36: #{tpu_custom_call.1} parent=31 // pred_fallthru
          _
        %s272 = sand.u32 %s38, 1
        %s273 = scalar_lea.sflag [#allocation10], %s272
        %s274 = sand.u32 %s93, 1
        %s275 = smul.addr %s274, 2
        %s276 = scalar_lea.vmem [#allocation9], %s275
        // Predicated region
        $region37: #{tpu_custom_call.1} parent=31 // pred_check
          %p277 = pneg %p106
        $region38: #{tpu_custom_call.1} parent=31 // pred_check_branch
          %279 = sbr.rel (%p277) target = $region40
        $region39: #{tpu_custom_call.1} parent=31 // pred_region
          %281 = dma.done %s273, 32
        $region40: #{tpu_custom_call.1} parent=31 // pred_fallthru
          _
        %s282 = sand.u32 %s38, 1
        %s283 = scalar_lea.sflag [#allocation10], %s282
        %s284 = sand.u32 %s129, 1
        %s285 = smul.addr %s284, 8
        %s286 = scalar_lea.vmem [#allocation11], %s285
        // Predicated region
        $region41: #{tpu_custom_call.1} parent=31 // pred_check
          %p287 = pneg %p142
        $region42: #{tpu_custom_call.1} parent=31 // pred_check_branch
          %289 = sbr.rel (%p287) target = $region44
        $region43: #{tpu_custom_call.1} parent=31 // pred_region
          %291 = dma.done %s283, 128
        $region44: #{tpu_custom_call.1} parent=31 // pred_fallthru
          _
        %s292 = sand.u32 %s65, 1
        %s293 = scalar_lea.sflag [#allocation7], %s292
        %s294 = sand.u32 %s65, 1
        %s295 = smul.addr %s294, 2
        %s296 = scalar_lea.vmem [#allocation6], %s295
        %p297 = pneg %p78
        %p298 = pneg %p75
        %s299 = sand.u32 %s38, 1
        %s300 = scalar_lea.sflag [#allocation10], %s299
        %s301 = sand.u32 %s93, 1
        %s302 = smul.addr %s301, 2
        %s303 = scalar_lea.vmem [#allocation9], %s302
        %p304 = pneg %p106
        %p305 = pneg %p103
        %s306 = sand.u32 %s38, 1
        %s307 = scalar_lea.sflag [#allocation10], %s306
        %s308 = sand.u32 %s129, 1
        %s309 = smul.addr %s308, 8
        %s310 = scalar_lea.vmem [#allocation11], %s309
        %p311 = pneg %p142
        %p312 = pneg %p139
        %p313 = pneg %p170
        %p314 = pneg %p167
        %s315 = sand.u32 %s157, 1
        %s316 = scalar_lea.sflag [#allocation8], %s315
        %s317 = sand.u32 %s157, 1
        %s318 = smul.addr %s317, 4
        %s319 = scalar_lea.vmem [#allocation12], %s318
        %s320 = smul.u32 %s43, 2
        %s321 = sadd.s32 %s320, %s44
        %s322 = sld [smem:[#allocation4 + %s321]]
        %s323 = sadd.s32 %s322, %s45
        %s324 = smul.u32 2, %s323
        %s325 = smul.u32 %s43, 2
        %s326 = sadd.s32 %s325, %s44
        %p327 = scmp.eq.s32.totalorder %s45, 0
        // Predicated region
        $region45: #{tpu_custom_call.1} parent=31 // pred_check
          %p328 = pneg %p327
        $region46: #{tpu_custom_call.1} parent=31 // pred_check_branch
          %330 = sbr.rel (%p328) target = $region48
        $region47: #{tpu_custom_call.1} parent=31 // pred_region
          %331 = vst [vmem:[#allocation2] sm:$0xf] 0.0
        $region48: #{tpu_custom_call.1} parent=31 // pred_fallthru
          _
        %s332 = sld [smem:[#allocation5 + %s326]]
        %p333 = scmp.lt.s32.totalorder %s45, %s332
        // Predicated region
        $region49: #{tpu_custom_call.1} parent=31 // pred_check
          %p334 = pneg %p333
        $region50: #{tpu_custom_call.1} parent=31 // pred_check_branch
          %336 = sbr.rel (%p334) target = $region52
        $region51: #{tpu_custom_call.1} parent=31 // pred_region
          %v337 = vld [vmem:[%s266] sm:$0x3]
          %v338 = vld [vmem:[%s276] sm:$0x3]
          %v339 = vadd.f32 %v337, %v338
          %v340 = vfloor.f32 %v339
          %v341 = vsub.f32 %v339, %v340
          %s342 = sld [smem:[#allocation4 + %s326]]
          %s343 = sadd.s32 %s342, %s45
          %s344 = smul.u32 %s343, 256
          %v345 = vlaneseq
          %v346 = vshrl.u32 %v345, 7
          %v347 = vadd.s32 %v346, 8
          %v348 = vadd.s32 %v346, 16
          %v349 = vadd.s32 %v346, 24
          %v350 = vadd.s32 %v346, 32
          %v351 = vadd.s32 %v346, 40
          %v352 = vadd.s32 %v346, 48
          %v353 = vadd.s32 %v346, 56
          %v354 = vadd.s32 %v346, 64
          %v355 = vadd.s32 %v346, 72
          %v356 = vadd.s32 %v346, 80
          %v357 = vadd.s32 %v346, 88
          %v358 = vadd.s32 %v346, 96
          %v359 = vadd.s32 %v346, 104
          %v360 = vadd.s32 %v346, 112
          %v361 = vadd.s32 %v346, 120
          %v362 = vadd.s32 %v346, 128
          %v363 = vadd.s32 %v346, 136
          %v364 = vadd.s32 %v346, 144
          %v365 = vadd.s32 %v346, 152
          %v366 = vadd.s32 %v346, 160
          %v367 = vadd.s32 %v346, 168
          %v368 = vadd.s32 %v346, 176
          %v369 = vadd.s32 %v346, 184
          %v370 = vadd.s32 %v346, 192
          %v371 = vadd.s32 %v346, 200
          %v372 = vadd.s32 %v346, 208
          %v373 = vadd.s32 %v346, 216
          %v374 = vadd.s32 %v346, 224
          %v375 = vadd.s32 %v346, 232
          %v376 = vadd.s32 %v346, 240
          %v377 = vadd.s32 %v346, 248
          %v378 = vstv %s344
          %v379 = vadd.s32 %v378, %v346
          %v380 = vadd.s32 %v378, %v347
          %v381 = vadd.s32 %v378, %v348
          %v382 = vadd.s32 %v378, %v349
          %v383 = vadd.s32 %v378, %v350
          %v384 = vadd.s32 %v378, %v351
          %v385 = vadd.s32 %v378, %v352
          %v386 = vadd.s32 %v378, %v353
          %v387 = vadd.s32 %v378, %v354
          %v388 = vadd.s32 %v378, %v355
          %v389 = vadd.s32 %v378, %v356
          %v390 = vadd.s32 %v378, %v357
          %v391 = vadd.s32 %v378, %v358
          %v392 = vadd.s32 %v378, %v359
          %v393 = vadd.s32 %v378, %v360
          %v394 = vadd.s32 %v378, %v361
          %v395 = vadd.s32 %v378, %v362
          %v396 = vadd.s32 %v378, %v363
          %v397 = vadd.s32 %v378, %v364
          %v398 = vadd.s32 %v378, %v365
          %v399 = vadd.s32 %v378, %v366
          %v400 = vadd.s32 %v378, %v367
          %v401 = vadd.s32 %v378, %v368
          %v402 = vadd.s32 %v378, %v369
          %v403 = vadd.s32 %v378, %v370
          %v404 = vadd.s32 %v378, %v371
          %v405 = vadd.s32 %v378, %v372
          %v406 = vadd.s32 %v378, %v373
          %v407 = vadd.s32 %v378, %v374
          %v408 = vadd.s32 %v378, %v375
          %v409 = vadd.s32 %v378, %v376
          %v410 = vadd.s32 %v378, %v377
          %v411 = vld [vmem:[%s286] sm:$0xff]
          %v412 = vld [vmem:[#allocation2] sm:$0xf]
          %v413 = vadd.f32 %v340, 0.0
          %v414 = vsub.f32 1.0, %v341
          %v416 = vrot.slane %v414, 1
          %v418 = vmul.f32 %v414, %v416
          %vm419 = vcmp.ge.f32.partialorder %v413, 0.0
          %vm420 = vcmp.le.f32.partialorder %v413, 15.0
          %vm421 = vmand %vm419, %vm420
          %v422 = vsel %vm419, 1, 0
          %v423 = vrot.slane %v422, 1
          %vm424 = vcmp.ne.s32.totalorder %v423, 0
          %vm425 = vmand %vm421, %vm424
          %v426 = vsel %vm420, 1, 0
          %v427 = vrot.slane %v426, 1
          %vm428 = vcmp.ne.s32.totalorder %v427, 0
          %vm429 = vmand %vm425, %vm428
          %v430 = vsel %vm429, %v418, 0.0
          %v431 = vmax.f32 %v413, 0.0
          %v432 = vmin.f32 %v431, 15.0
          %v433 = vmul.f32 %v432, 16.0
          %v435 = vrot.slane %v432, 1
          %v437 = vadd.f32 %v433, %v435
          %v438 = vcvt.f32.s32.to.zero.pseudo %v437
          %v439 = vperm.slane %v438, 0
          %vm440 = vcmp.eq.s32.totalorder %v379, %v439
          %vm441 = vcmp.eq.s32.totalorder %v380, %v439
          %vm442 = vcmp.eq.s32.totalorder %v381, %v439
          %vm443 = vcmp.eq.s32.totalorder %v382, %v439
          %vm444 = vcmp.eq.s32.totalorder %v383, %v439
          %vm445 = vcmp.eq.s32.totalorder %v384, %v439
          %vm446 = vcmp.eq.s32.totalorder %v385, %v439
          %vm447 = vcmp.eq.s32.totalorder %v386, %v439
          %vm448 = vcmp.eq.s32.totalorder %v387, %v439
          %vm449 = vcmp.eq.s32.totalorder %v388, %v439
          %vm450 = vcmp.eq.s32.totalorder %v389, %v439
          %vm451 = vcmp.eq.s32.totalorder %v390, %v439
          %vm452 = vcmp.eq.s32.totalorder %v391, %v439
          %vm453 = vcmp.eq.s32.totalorder %v392, %v439
          %vm454 = vcmp.eq.s32.totalorder %v393, %v439
          %vm455 = vcmp.eq.s32.totalorder %v394, %v439
          %vm456 = vcmp.eq.s32.totalorder %v395, %v439
          %vm457 = vcmp.eq.s32.totalorder %v396, %v439
          %vm458 = vcmp.eq.s32.totalorder %v397, %v439
          %vm459 = vcmp.eq.s32.totalorder %v398, %v439
          %vm460 = vcmp.eq.s32.totalorder %v399, %v439
          %vm461 = vcmp.eq.s32.totalorder %v400, %v439
          %vm462 = vcmp.eq.s32.totalorder %v401, %v439
          %vm463 = vcmp.eq.s32.totalorder %v402, %v439
          %vm464 = vcmp.eq.s32.totalorder %v403, %v439
          %vm465 = vcmp.eq.s32.totalorder %v404, %v439
          %vm466 = vcmp.eq.s32.totalorder %v405, %v439
          %vm467 = vcmp.eq.s32.totalorder %v406, %v439
          %vm468 = vcmp.eq.s32.totalorder %v407, %v439
          %vm469 = vcmp.eq.s32.totalorder %v408, %v439
          %vm470 = vcmp.eq.s32.totalorder %v409, %v439
          %vm471 = vcmp.eq.s32.totalorder %v410, %v439
          %v472 = vsel %vm440, 1, 0
          %v473 = vsel %vm441, 1, 0
          %v474 = vsel %vm442, 1, 0
          %v475 = vsel %vm443, 1, 0
          %v476 = vsel %vm444, 1, 0
          %v477 = vsel %vm445, 1, 0
          %v478 = vsel %vm446, 1, 0
          %v479 = vsel %vm447, 1, 0
          %v480 = vsel %vm448, 1, 0
          %v481 = vsel %vm449, 1, 0
          %v482 = vsel %vm450, 1, 0
          %v483 = vsel %vm451, 1, 0
          %v484 = vsel %vm452, 1, 0
          %v485 = vsel %vm453, 1, 0
          %v486 = vsel %vm454, 1, 0
          %v487 = vsel %vm455, 1, 0
          %v488 = vsel %vm456, 1, 0
          %v489 = vsel %vm457, 1, 0
          %v490 = vsel %vm458, 1, 0
          %v491 = vsel %vm459, 1, 0
          %v492 = vsel %vm460, 1, 0
          %v493 = vsel %vm461, 1, 0
          %v494 = vsel %vm462, 1, 0
          %v495 = vsel %vm463, 1, 0
          %v496 = vsel %vm464, 1, 0
          %v497 = vsel %vm465, 1, 0
          %v498 = vsel %vm466, 1, 0
          %v499 = vsel %vm467, 1, 0
          %v500 = vsel %vm468, 1, 0
          %v501 = vsel %vm469, 1, 0
          %v502 = vsel %vm470, 1, 0
          %v503 = vsel %vm471, 1, 0
          %v504 = vcvt.s32.f32 %v472
          %v505 = vcvt.s32.f32 %v473
          %v506 = vcvt.s32.f32 %v474
          %v507 = vcvt.s32.f32 %v475
          %v508 = vcvt.s32.f32 %v476
          %v509 = vcvt.s32.f32 %v477
          %v510 = vcvt.s32.f32 %v478
          %v511 = vcvt.s32.f32 %v479
          %v512 = vcvt.s32.f32 %v480
          %v513 = vcvt.s32.f32 %v481
          %v514 = vcvt.s32.f32 %v482
          %v515 = vcvt.s32.f32 %v483
          %v516 = vcvt.s32.f32 %v484
          %v517 = vcvt.s32.f32 %v485
          %v518 = vcvt.s32.f32 %v486
          %v519 = vcvt.s32.f32 %v487
          %v520 = vcvt.s32.f32 %v488
          %v521 = vcvt.s32.f32 %v489
          %v522 = vcvt.s32.f32 %v490
          %v523 = vcvt.s32.f32 %v491
          %v524 = vcvt.s32.f32 %v492
          %v525 = vcvt.s32.f32 %v493
          %v526 = vcvt.s32.f32 %v494
          %v527 = vcvt.s32.f32 %v495
          %v528 = vcvt.s32.f32 %v496
          %v529 = vcvt.s32.f32 %v497
          %v530 = vcvt.s32.f32 %v498
          %v531 = vcvt.s32.f32 %v499
          %v532 = vcvt.s32.f32 %v500
          %v533 = vcvt.s32.f32 %v501
          %v534 = vcvt.s32.f32 %v502
          %v535 = vcvt.s32.f32 %v503
          %537 = vst [vmem:[#allocation1] ss:$2 sm:$0xff] %v411
          %v538 = vld.sshfl [vmem:[#allocation1] sm:$0xff pattern:$0x75316420]
          %v539 = vld.sshfl [vmem:[#allocation1 + $0x8] sm:$0xff pattern:$0x75316420]
          %542 = vmatpush.msra.mxu0 %v519
          %543 = vmatpush.msra.mxu0 %v518
          %544 = vmatpush.msra.mxu0 %v517
          %545 = vmatpush.msra.mxu0 %v516
          %546 = vmatpush.msra.mxu0 %v515
          %547 = vmatpush.msra.mxu0 %v514
          %548 = vmatpush.msra.mxu0 %v513
          %549 = vmatpush.msra.mxu0 %v512
          %550 = vmatpush.msra.mxu0 %v511
          %551 = vmatpush.msra.mxu0 %v510
          %552 = vmatpush.msra.mxu0 %v509
          %553 = vmatpush.msra.mxu0 %v508
          %554 = vmatpush.msra.mxu0 %v507
          %555 = vmatpush.msra.mxu0 %v506
          %556 = vmatpush.msra.mxu0 %v505
          %557 = vmatpush.msra.mxu0 %v504
          %558 = vmatmul.f32.gmra.mxu0 %v538
          %v559 = vpop.f32.mrf.mxu0
          %v560 = vadd.f32 0.0, %v559
          %561 = vdwg.mxu0
          %562 = vmatpush.msra.mxu0 %v535
          %563 = vmatpush.msra.mxu0 %v534
          %564 = vmatpush.msra.mxu0 %v533
          %565 = vmatpush.msra.mxu0 %v532
          %566 = vmatpush.msra.mxu0 %v531
          %567 = vmatpush.msra.mxu0 %v530
          %568 = vmatpush.msra.mxu0 %v529
          %569 = vmatpush.msra.mxu0 %v528
          %570 = vmatpush.msra.mxu0 %v527
          %571 = vmatpush.msra.mxu0 %v526
          %572 = vmatpush.msra.mxu0 %v525
          %573 = vmatpush.msra.mxu0 %v524
          %574 = vmatpush.msra.mxu0 %v523
          %575 = vmatpush.msra.mxu0 %v522
          %576 = vmatpush.msra.mxu0 %v521
          %577 = vmatpush.msra.mxu0 %v520
          %578 = vmatmul.f32.gmra.mxu0 %v539
          %v579 = vpop.f32.mrf.mxu0
          %v580 = vadd.f32 %v560, %v579
          %581 = vdwg.mxu0
          %v582 = vperm.slane %v430, 0
          %v583 = vmul.f32 %v582, %v580
          %v584 = vadd.f32 %v340, 1.0
          %v586 = vrot.slane %v341, 1
          %v588 = vmul.f32 %v414, %v586
          %vm589 = vcmp.ge.f32.partialorder %v584, 0.0
          %v590 = vsel %vm589, 1, 0
          %v591 = vrot.slane %v590, 1
          %vm592 = vcmp.ne.s32.totalorder %v591, 0
          %vm593 = vmand %vm421, %vm592
          %vm594 = vcmp.le.f32.partialorder %v584, 15.0
          %v595 = vsel %vm594, 1, 0
          %v596 = vrot.slane %v595, 1
          %vm597 = vcmp.ne.s32.totalorder %v596, 0
          %vm598 = vmand %vm593, %vm597
          %v599 = vsel %vm598, %v588, 0.0
          %v600 = vmax.f32 %v584, 0.0
          %v601 = vmin.f32 %v600, 15.0
          %v603 = vrot.slane %v601, 1
          %v605 = vadd.f32 %v433, %v603
          %v606 = vcvt.f32.s32.to.zero.pseudo %v605
          %v607 = vperm.slane %v606, 0
          %vm608 = vcmp.eq.s32.totalorder %v379, %v607
          %vm609 = vcmp.eq.s32.totalorder %v380, %v607
          %vm610 = vcmp.eq.s32.totalorder %v381, %v607
          %vm611 = vcmp.eq.s32.totalorder %v382, %v607
          %vm612 = vcmp.eq.s32.totalorder %v383, %v607
          %vm613 = vcmp.eq.s32.totalorder %v384, %v607
          %vm614 = vcmp.eq.s32.totalorder %v385, %v607
          %vm615 = vcmp.eq.s32.totalorder %v386, %v607
          %vm616 = vcmp.eq.s32.totalorder %v387, %v607
          %vm617 = vcmp.eq.s32.totalorder %v388, %v607
          %vm618 = vcmp.eq.s32.totalorder %v389, %v607
          %vm619 = vcmp.eq.s32.totalorder %v390, %v607
          %vm620 = vcmp.eq.s32.totalorder %v391, %v607
          %vm621 = vcmp.eq.s32.totalorder %v392, %v607
          %vm622 = vcmp.eq.s32.totalorder %v393, %v607
          %vm623 = vcmp.eq.s32.totalorder %v394, %v607
          %vm624 = vcmp.eq.s32.totalorder %v395, %v607
          %vm625 = vcmp.eq.s32.totalorder %v396, %v607
          %vm626 = vcmp.eq.s32.totalorder %v397, %v607
          %vm627 = vcmp.eq.s32.totalorder %v398, %v607
          %vm628 = vcmp.eq.s32.totalorder %v399, %v607
          %vm629 = vcmp.eq.s32.totalorder %v400, %v607
          %vm630 = vcmp.eq.s32.totalorder %v401, %v607
          %vm631 = vcmp.eq.s32.totalorder %v402, %v607
          %vm632 = vcmp.eq.s32.totalorder %v403, %v607
          %vm633 = vcmp.eq.s32.totalorder %v404, %v607
          %vm634 = vcmp.eq.s32.totalorder %v405, %v607
          %vm635 = vcmp.eq.s32.totalorder %v406, %v607
          %vm636 = vcmp.eq.s32.totalorder %v407, %v607
          %vm637 = vcmp.eq.s32.totalorder %v408, %v607
          %vm638 = vcmp.eq.s32.totalorder %v409, %v607
          %vm639 = vcmp.eq.s32.totalorder %v410, %v607
          %v640 = vsel %vm608, 1, 0
          %v641 = vsel %vm609, 1, 0
          %v642 = vsel %vm610, 1, 0
          %v643 = vsel %vm611, 1, 0
          %v644 = vsel %vm612, 1, 0
          %v645 = vsel %vm613, 1, 0
          %v646 = vsel %vm614, 1, 0
          %v647 = vsel %vm615, 1, 0
          %v648 = vsel %vm616, 1, 0
          %v649 = vsel %vm617, 1, 0
          %v650 = vsel %vm618, 1, 0
          %v651 = vsel %vm619, 1, 0
          %v652 = vsel %vm620, 1, 0
          %v653 = vsel %vm621, 1, 0
          %v654 = vsel %vm622, 1, 0
          %v655 = vsel %vm623, 1, 0
          %v656 = vsel %vm624, 1, 0
          %v657 = vsel %vm625, 1, 0
          %v658 = vsel %vm626, 1, 0
          %v659 = vsel %vm627, 1, 0
          %v660 = vsel %vm628, 1, 0
          %v661 = vsel %vm629, 1, 0
          %v662 = vsel %vm630, 1, 0
          %v663 = vsel %vm631, 1, 0
          %v664 = vsel %vm632, 1, 0
          %v665 = vsel %vm633, 1, 0
          %v666 = vsel %vm634, 1, 0
          %v667 = vsel %vm635, 1, 0
          %v668 = vsel %vm636, 1, 0
          %v669 = vsel %vm637, 1, 0
          %v670 = vsel %vm638, 1, 0
          %v671 = vsel %vm639, 1, 0
          %v672 = vcvt.s32.f32 %v640
          %v673 = vcvt.s32.f32 %v641
          %v674 = vcvt.s32.f32 %v642
          %v675 = vcvt.s32.f32 %v643
          %v676 = vcvt.s32.f32 %v644
          %v677 = vcvt.s32.f32 %v645
          %v678 = vcvt.s32.f32 %v646
          %v679 = vcvt.s32.f32 %v647
          %v680 = vcvt.s32.f32 %v648
          %v681 = vcvt.s32.f32 %v649
          %v682 = vcvt.s32.f32 %v650
          %v683 = vcvt.s32.f32 %v651
          %v684 = vcvt.s32.f32 %v652
          %v685 = vcvt.s32.f32 %v653
          %v686 = vcvt.s32.f32 %v654
          %v687 = vcvt.s32.f32 %v655
          %v688 = vcvt.s32.f32 %v656
          %v689 = vcvt.s32.f32 %v657
          %v690 = vcvt.s32.f32 %v658
          %v691 = vcvt.s32.f32 %v659
          %v692 = vcvt.s32.f32 %v660
          %v693 = vcvt.s32.f32 %v661
          %v694 = vcvt.s32.f32 %v662
          %v695 = vcvt.s32.f32 %v663
          %v696 = vcvt.s32.f32 %v664
          %v697 = vcvt.s32.f32 %v665
          %v698 = vcvt.s32.f32 %v666
          %v699 = vcvt.s32.f32 %v667
          %v700 = vcvt.s32.f32 %v668
          %v701 = vcvt.s32.f32 %v669
          %v702 = vcvt.s32.f32 %v670
          %v703 = vcvt.s32.f32 %v671
          %704 = vst [vmem:[#allocation1] ss:$2 sm:$0xff] %v411
          %v705 = vld.sshfl [vmem:[#allocation1] sm:$0xff pattern:$0x75316420]
          %v706 = vld.sshfl [vmem:[#allocation1 + $0x8] sm:$0xff pattern:$0x75316420]
          %709 = vmatpush.msra.mxu0 %v687
          %710 = vmatpush.msra.mxu0 %v686
          %711 = vmatpush.msra.mxu0 %v685
          %712 = vmatpush.msra.mxu0 %v684
          %713 = vmatpush.msra.mxu0 %v683
          %714 = vmatpush.msra.mxu0 %v682
          %715 = vmatpush.msra.mxu0 %v681
          %716 = vmatpush.msra.mxu0 %v680
          %717 = vmatpush.msra.mxu0 %v679
          %718 = vmatpush.msra.mxu0 %v678
          %719 = vmatpush.msra.mxu0 %v677
          %720 = vmatpush.msra.mxu0 %v676
          %721 = vmatpush.msra.mxu0 %v675
          %722 = vmatpush.msra.mxu0 %v674
          %723 = vmatpush.msra.mxu0 %v673
          %724 = vmatpush.msra.mxu0 %v672
          %725 = vmatmul.f32.gmra.mxu0 %v705
          %v726 = vpop.f32.mrf.mxu0
          %v727 = vadd.f32 0.0, %v726
          %728 = vdwg.mxu0
          %729 = vmatpush.msra.mxu0 %v703
          %730 = vmatpush.msra.mxu0 %v702
          %731 = vmatpush.msra.mxu0 %v701
          %732 = vmatpush.msra.mxu0 %v700
          %733 = vmatpush.msra.mxu0 %v699
          %734 = vmatpush.msra.mxu0 %v698
          %735 = vmatpush.msra.mxu0 %v697
          %736 = vmatpush.msra.mxu0 %v696
          %737 = vmatpush.msra.mxu0 %v695
          %738 = vmatpush.msra.mxu0 %v694
          %739 = vmatpush.msra.mxu0 %v693
          %740 = vmatpush.msra.mxu0 %v692
          %741 = vmatpush.msra.mxu0 %v691
          %742 = vmatpush.msra.mxu0 %v690
          %743 = vmatpush.msra.mxu0 %v689
          %744 = vmatpush.msra.mxu0 %v688
          %745 = vmatmul.f32.gmra.mxu0 %v706
          %v746 = vpop.f32.mrf.mxu0
          %v747 = vadd.f32 %v727, %v746
          %748 = vdwg.mxu0
          %v749 = vperm.slane %v599, 0
          %v750 = vmul.f32 %v749, %v747
          %v751 = vadd.f32 %v583, %v750
          %v752 = vmul.f32 %v341, %v416
          %vm753 = vmand %vm589, %vm594
          %vm754 = vmand %vm753, %vm424
          %vm755 = vmand %vm754, %vm428
          %v756 = vsel %vm755, %v752, 0.0
          %v757 = vmul.f32 %v601, 16.0
          %v758 = vadd.f32 %v757, %v435
          %v759 = vcvt.f32.s32.to.zero.pseudo %v758
          %v760 = vperm.slane %v759, 0
          %vm761 = vcmp.eq.s32.totalorder %v379, %v760
          %vm762 = vcmp.eq.s32.totalorder %v380, %v760
          %vm763 = vcmp.eq.s32.totalorder %v381, %v760
          %vm764 = vcmp.eq.s32.totalorder %v382, %v760
          %vm765 = vcmp.eq.s32.totalorder %v383, %v760
          %vm766 = vcmp.eq.s32.totalorder %v384, %v760
          %vm767 = vcmp.eq.s32.totalorder %v385, %v760
          %vm768 = vcmp.eq.s32.totalorder %v386, %v760
          %vm769 = vcmp.eq.s32.totalorder %v387, %v760
          %vm770 = vcmp.eq.s32.totalorder %v388, %v760
          %vm771 = vcmp.eq.s32.totalorder %v389, %v760
          %vm772 = vcmp.eq.s32.totalorder %v390, %v760
          %vm773 = vcmp.eq.s32.totalorder %v391, %v760
          %vm774 = vcmp.eq.s32.totalorder %v392, %v760
          %vm775 = vcmp.eq.s32.totalorder %v393, %v760
          %vm776 = vcmp.eq.s32.totalorder %v394, %v760
          %vm777 = vcmp.eq.s32.totalorder %v395, %v760
          %vm778 = vcmp.eq.s32.totalorder %v396, %v760
          %vm779 = vcmp.eq.s32.totalorder %v397, %v760
          %vm780 = vcmp.eq.s32.totalorder %v398, %v760
          %vm781 = vcmp.eq.s32.totalorder %v399, %v760
          %vm782 = vcmp.eq.s32.totalorder %v400, %v760
          %vm783 = vcmp.eq.s32.totalorder %v401, %v760
          %vm784 = vcmp.eq.s32.totalorder %v402, %v760
          %vm785 = vcmp.eq.s32.totalorder %v403, %v760
          %vm786 = vcmp.eq.s32.totalorder %v404, %v760
          %vm787 = vcmp.eq.s32.totalorder %v405, %v760
          %vm788 = vcmp.eq.s32.totalorder %v406, %v760
          %vm789 = vcmp.eq.s32.totalorder %v407, %v760
          %vm790 = vcmp.eq.s32.totalorder %v408, %v760
          %vm791 = vcmp.eq.s32.totalorder %v409, %v760
          %vm792 = vcmp.eq.s32.totalorder %v410, %v760
          %v793 = vsel %vm761, 1, 0
          %v794 = vsel %vm762, 1, 0
          %v795 = vsel %vm763, 1, 0
          %v796 = vsel %vm764, 1, 0
          %v797 = vsel %vm765, 1, 0
          %v798 = vsel %vm766, 1, 0
          %v799 = vsel %vm767, 1, 0
          %v800 = vsel %vm768, 1, 0
          %v801 = vsel %vm769, 1, 0
          %v802 = vsel %vm770, 1, 0
          %v803 = vsel %vm771, 1, 0
          %v804 = vsel %vm772, 1, 0
          %v805 = vsel %vm773, 1, 0
          %v806 = vsel %vm774, 1, 0
          %v807 = vsel %vm775, 1, 0
          %v808 = vsel %vm776, 1, 0
          %v809 = vsel %vm777, 1, 0
          %v810 = vsel %vm778, 1, 0
          %v811 = vsel %vm779, 1, 0
          %v812 = vsel %vm780, 1, 0
          %v813 = vsel %vm781, 1, 0
          %v814 = vsel %vm782, 1, 0
          %v815 = vsel %vm783, 1, 0
          %v816 = vsel %vm784, 1, 0
          %v817 = vsel %vm785, 1, 0
          %v818 = vsel %vm786, 1, 0
          %v819 = vsel %vm787, 1, 0
          %v820 = vsel %vm788, 1, 0
          %v821 = vsel %vm789, 1, 0
          %v822 = vsel %vm790, 1, 0
          %v823 = vsel %vm791, 1, 0
          %v824 = vsel %vm792, 1, 0
          %v825 = vcvt.s32.f32 %v793
          %v826 = vcvt.s32.f32 %v794
          %v827 = vcvt.s32.f32 %v795
          %v828 = vcvt.s32.f32 %v796
          %v829 = vcvt.s32.f32 %v797
          %v830 = vcvt.s32.f32 %v798
          %v831 = vcvt.s32.f32 %v799
          %v832 = vcvt.s32.f32 %v800
          %v833 = vcvt.s32.f32 %v801
          %v834 = vcvt.s32.f32 %v802
          %v835 = vcvt.s32.f32 %v803
          %v836 = vcvt.s32.f32 %v804
          %v837 = vcvt.s32.f32 %v805
          %v838 = vcvt.s32.f32 %v806
          %v839 = vcvt.s32.f32 %v807
          %v840 = vcvt.s32.f32 %v808
          %v841 = vcvt.s32.f32 %v809
          %v842 = vcvt.s32.f32 %v810
          %v843 = vcvt.s32.f32 %v811
          %v844 = vcvt.s32.f32 %v812
          %v845 = vcvt.s32.f32 %v813
          %v846 = vcvt.s32.f32 %v814
          %v847 = vcvt.s32.f32 %v815
          %v848 = vcvt.s32.f32 %v816
          %v849 = vcvt.s32.f32 %v817
          %v850 = vcvt.s32.f32 %v818
          %v851 = vcvt.s32.f32 %v819
          %v852 = vcvt.s32.f32 %v820
          %v853 = vcvt.s32.f32 %v821
          %v854 = vcvt.s32.f32 %v822
          %v855 = vcvt.s32.f32 %v823
          %v856 = vcvt.s32.f32 %v824
          %857 = vst [vmem:[#allocation1] ss:$2 sm:$0xff] %v411
          %v858 = vld.sshfl [vmem:[#allocation1] sm:$0xff pattern:$0x75316420]
          %v859 = vld.sshfl [vmem:[#allocation1 + $0x8] sm:$0xff pattern:$0x75316420]
          %862 = vmatpush.msra.mxu0 %v840
          %863 = vmatpush.msra.mxu0 %v839
          %864 = vmatpush.msra.mxu0 %v838
          %865 = vmatpush.msra.mxu0 %v837
          %866 = vmatpush.msra.mxu0 %v836
          %867 = vmatpush.msra.mxu0 %v835
          %868 = vmatpush.msra.mxu0 %v834
          %869 = vmatpush.msra.mxu0 %v833
          %870 = vmatpush.msra.mxu0 %v832
          %871 = vmatpush.msra.mxu0 %v831
          %872 = vmatpush.msra.mxu0 %v830
          %873 = vmatpush.msra.mxu0 %v829
          %874 = vmatpush.msra.mxu0 %v828
          %875 = vmatpush.msra.mxu0 %v827
          %876 = vmatpush.msra.mxu0 %v826
          %877 = vmatpush.msra.mxu0 %v825
          %878 = vmatmul.f32.gmra.mxu0 %v858
          %v879 = vpop.f32.mrf.mxu0
          %v880 = vadd.f32 0.0, %v879
          %881 = vdwg.mxu0
          %882 = vmatpush.msra.mxu0 %v856
          %883 = vmatpush.msra.mxu0 %v855
          %884 = vmatpush.msra.mxu0 %v854
          %885 = vmatpush.msra.mxu0 %v853
          %886 = vmatpush.msra.mxu0 %v852
          %887 = vmatpush.msra.mxu0 %v851
          %888 = vmatpush.msra.mxu0 %v850
          %889 = vmatpush.msra.mxu0 %v849
          %890 = vmatpush.msra.mxu0 %v848
          %891 = vmatpush.msra.mxu0 %v847
          %892 = vmatpush.msra.mxu0 %v846
          %893 = vmatpush.msra.mxu0 %v845
          %894 = vmatpush.msra.mxu0 %v844
          %895 = vmatpush.msra.mxu0 %v843
          %896 = vmatpush.msra.mxu0 %v842
          %897 = vmatpush.msra.mxu0 %v841
          %898 = vmatmul.f32.gmra.mxu0 %v859
          %v899 = vpop.f32.mrf.mxu0
          %v900 = vadd.f32 %v880, %v899
          %901 = vdwg.mxu0
          %v902 = vperm.slane %v756, 0
          %v903 = vmul.f32 %v902, %v900
          %v904 = vadd.f32 %v751, %v903
          %v905 = vmul.f32 %v341, %v586
          %vm906 = vmand %vm753, %vm592
          %vm907 = vmand %vm906, %vm597
          %v908 = vsel %vm907, %v905, 0.0
          %v909 = vadd.f32 %v757, %v603
          %v910 = vcvt.f32.s32.to.zero.pseudo %v909
          %v911 = vperm.slane %v910, 0
          %vm912 = vcmp.eq.s32.totalorder %v379, %v911
          %vm913 = vcmp.eq.s32.totalorder %v380, %v911
          %vm914 = vcmp.eq.s32.totalorder %v381, %v911
          %vm915 = vcmp.eq.s32.totalorder %v382, %v911
          %vm916 = vcmp.eq.s32.totalorder %v383, %v911
          %vm917 = vcmp.eq.s32.totalorder %v384, %v911
          %vm918 = vcmp.eq.s32.totalorder %v385, %v911
          %vm919 = vcmp.eq.s32.totalorder %v386, %v911
          %vm920 = vcmp.eq.s32.totalorder %v387, %v911
          %vm921 = vcmp.eq.s32.totalorder %v388, %v911
          %vm922 = vcmp.eq.s32.totalorder %v389, %v911
          %vm923 = vcmp.eq.s32.totalorder %v390, %v911
          %vm924 = vcmp.eq.s32.totalorder %v391, %v911
          %vm925 = vcmp.eq.s32.totalorder %v392, %v911
          %vm926 = vcmp.eq.s32.totalorder %v393, %v911
          %vm927 = vcmp.eq.s32.totalorder %v394, %v911
          %vm928 = vcmp.eq.s32.totalorder %v395, %v911
          %vm929 = vcmp.eq.s32.totalorder %v396, %v911
          %vm930 = vcmp.eq.s32.totalorder %v397, %v911
          %vm931 = vcmp.eq.s32.totalorder %v398, %v911
          %vm932 = vcmp.eq.s32.totalorder %v399, %v911
          %vm933 = vcmp.eq.s32.totalorder %v400, %v911
          %vm934 = vcmp.eq.s32.totalorder %v401, %v911
          %vm935 = vcmp.eq.s32.totalorder %v402, %v911
          %vm936 = vcmp.eq.s32.totalorder %v403, %v911
          %vm937 = vcmp.eq.s32.totalorder %v404, %v911
          %vm938 = vcmp.eq.s32.totalorder %v405, %v911
          %vm939 = vcmp.eq.s32.totalorder %v406, %v911
          %vm940 = vcmp.eq.s32.totalorder %v407, %v911
          %vm941 = vcmp.eq.s32.totalorder %v408, %v911
          %vm942 = vcmp.eq.s32.totalorder %v409, %v911
          %vm943 = vcmp.eq.s32.totalorder %v410, %v911
          %v944 = vsel %vm912, 1, 0
          %v945 = vsel %vm913, 1, 0
          %v946 = vsel %vm914, 1, 0
          %v947 = vsel %vm915, 1, 0
          %v948 = vsel %vm916, 1, 0
          %v949 = vsel %vm917, 1, 0
          %v950 = vsel %vm918, 1, 0
          %v951 = vsel %vm919, 1, 0
          %v952 = vsel %vm920, 1, 0
          %v953 = vsel %vm921, 1, 0
          %v954 = vsel %vm922, 1, 0
          %v955 = vsel %vm923, 1, 0
          %v956 = vsel %vm924, 1, 0
          %v957 = vsel %vm925, 1, 0
          %v958 = vsel %vm926, 1, 0
          %v959 = vsel %vm927, 1, 0
          %v960 = vsel %vm928, 1, 0
          %v961 = vsel %vm929, 1, 0
          %v962 = vsel %vm930, 1, 0
          %v963 = vsel %vm931, 1, 0
          %v964 = vsel %vm932, 1, 0
          %v965 = vsel %vm933, 1, 0
          %v966 = vsel %vm934, 1, 0
          %v967 = vsel %vm935, 1, 0
          %v968 = vsel %vm936, 1, 0
          %v969 = vsel %vm937, 1, 0
          %v970 = vsel %vm938, 1, 0
          %v971 = vsel %vm939, 1, 0
          %v972 = vsel %vm940, 1, 0
          %v973 = vsel %vm941, 1, 0
          %v974 = vsel %vm942, 1, 0
          %v975 = vsel %vm943, 1, 0
          %v976 = vcvt.s32.f32 %v944
          %v977 = vcvt.s32.f32 %v945
          %v978 = vcvt.s32.f32 %v946
          %v979 = vcvt.s32.f32 %v947
          %v980 = vcvt.s32.f32 %v948
          %v981 = vcvt.s32.f32 %v949
          %v982 = vcvt.s32.f32 %v950
          %v983 = vcvt.s32.f32 %v951
          %v984 = vcvt.s32.f32 %v952
          %v985 = vcvt.s32.f32 %v953
          %v986 = vcvt.s32.f32 %v954
          %v987 = vcvt.s32.f32 %v955
          %v988 = vcvt.s32.f32 %v956
          %v989 = vcvt.s32.f32 %v957
          %v990 = vcvt.s32.f32 %v958
          %v991 = vcvt.s32.f32 %v959
          %v992 = vcvt.s32.f32 %v960
          %v993 = vcvt.s32.f32 %v961
          %v994 = vcvt.s32.f32 %v962
          %v995 = vcvt.s32.f32 %v963
          %v996 = vcvt.s32.f32 %v964
          %v997 = vcvt.s32.f32 %v965
          %v998 = vcvt.s32.f32 %v966
          %v999 = vcvt.s32.f32 %v967
          %v1000 = vcvt.s32.f32 %v968
          %v1001 = vcvt.s32.f32 %v969
          %v1002 = vcvt.s32.f32 %v970
          %v1003 = vcvt.s32.f32 %v971
          %v1004 = vcvt.s32.f32 %v972
          %v1005 = vcvt.s32.f32 %v973
          %v1006 = vcvt.s32.f32 %v974
          %v1007 = vcvt.s32.f32 %v975
          %1008 = vst [vmem:[#allocation1] ss:$2 sm:$0xff] %v411
          %v1009 = vld.sshfl [vmem:[#allocation1] sm:$0xff pattern:$0x75316420]
          %v1010 = vld.sshfl [vmem:[#allocation1 + $0x8] sm:$0xff pattern:$0x75316420]
          %1013 = vmatpush.msra.mxu0 %v991
          %1014 = vmatpush.msra.mxu0 %v990
          %1015 = vmatpush.msra.mxu0 %v989
          %1016 = vmatpush.msra.mxu0 %v988
          %1017 = vmatpush.msra.mxu0 %v987
          %1018 = vmatpush.msra.mxu0 %v986
          %1019 = vmatpush.msra.mxu0 %v985
          %1020 = vmatpush.msra.mxu0 %v984
          %1021 = vmatpush.msra.mxu0 %v983
          %1022 = vmatpush.msra.mxu0 %v982
          %1023 = vmatpush.msra.mxu0 %v981
          %1024 = vmatpush.msra.mxu0 %v980
          %1025 = vmatpush.msra.mxu0 %v979
          %1026 = vmatpush.msra.mxu0 %v978
          %1027 = vmatpush.msra.mxu0 %v977
          %1028 = vmatpush.msra.mxu0 %v976
          %1029 = vmatmul.f32.gmra.mxu0 %v1009
          %v1030 = vpop.f32.mrf.mxu0
          %v1031 = vadd.f32 0.0, %v1030
          %1032 = vdwg.mxu0
          %1033 = vmatpush.msra.mxu0 %v1007
          %1034 = vmatpush.msra.mxu0 %v1006
          %1035 = vmatpush.msra.mxu0 %v1005
          %1036 = vmatpush.msra.mxu0 %v1004
          %1037 = vmatpush.msra.mxu0 %v1003
          %1038 = vmatpush.msra.mxu0 %v1002
          %1039 = vmatpush.msra.mxu0 %v1001
          %1040 = vmatpush.msra.mxu0 %v1000
          %1041 = vmatpush.msra.mxu0 %v999
          %1042 = vmatpush.msra.mxu0 %v998
          %1043 = vmatpush.msra.mxu0 %v997
          %1044 = vmatpush.msra.mxu0 %v996
          %1045 = vmatpush.msra.mxu0 %v995
          %1046 = vmatpush.msra.mxu0 %v994
          %1047 = vmatpush.msra.mxu0 %v993
          %1048 = vmatpush.msra.mxu0 %v992
          %1049 = vmatmul.f32.gmra.mxu0 %v1010
          %v1050 = vpop.f32.mrf.mxu0
          %v1051 = vadd.f32 %v1031, %v1050
          %1052 = vdwg.mxu0
          %v1053 = vperm.slane %v908, 0
          %v1054 = vmul.f32 %v1053, %v1051
          %v1055 = vadd.f32 %v904, %v1054
          %v1056 = vadd.f32 %v412, %v1055
          %1057 = vst [vmem:[#allocation2] sm:$0xf] %v1056
        $region52: #{tpu_custom_call.1} parent=31 // pred_fallthru
          _
        // Predicated region
        $region53: #{tpu_custom_call.1} parent=31 // pred_check
          %p1058 = pneg %p327
        $region54: #{tpu_custom_call.1} parent=31 // pred_check_branch
          %1060 = sbr.rel (%p1058) target = $region56
        $region55: #{tpu_custom_call.1} parent=31 // pred_region
          %v1061 = vld [vmem:[#allocation2] sm:$0xf]
          %1062 = vst [vmem:[%s319] sm:$0xf] %v1061
        $region56: #{tpu_custom_call.1} parent=31 // pred_fallthru
          _
        %s1063 = sand.u32 %s157, 1
        %s1064 = scalar_lea.sflag [#allocation8], %s1063
        %s1065 = sand.u32 %s157, 1
        %s1066 = smul.addr %s1065, 4
        %s1067 = scalar_lea.vmem [#allocation12], %s1066
        // Predicated region
        $region57: #{tpu_custom_call.1} parent=31 // pred_check
          %p1068 = pneg %p167
        $region58: #{tpu_custom_call.1} parent=31 // pred_check_branch
          %1070 = sbr.rel (%p1068) target = $region60
        $region59: #{tpu_custom_call.1} parent=31 // pred_region
          %1072 = vsyncadd %s1064, 0
          %s1073 = smul.addr %s43, 2
          %s1074 = sadd.s32 %s44, %s1073
          %s1075 = smul.addr %s1074, 4
          %s1076 = scalar_lea.hbm %s5, %s1075
          %s1078 = sshll.u32 %s1067, 4
          %s1079 = int_to_ptr.vmem [resolvable:$true] %s1078
          %s1080 = sshll.u32 %s1076, 4
          %s1081 = int_to_ptr.hbm [resolvable:$true] %s1080
          %1083 = dma.vmem_to_hbm [thread:$0]  %s1079, 64, %s1081, %s1064
        $region60: #{tpu_custom_call.1} parent=31 // pred_fallthru
          _
      $region32: #{tpu_custom_call.1} parent=5 // pred_fallthru
        _
      %p1084 = scmp.le.s32.totalorder 2, %s33
      // Predicated region
      $region61: #{tpu_custom_call.1} parent=5 // pred_check
        %p1085 = pneg %p1084
      $region62: #{tpu_custom_call.1} parent=5 // pred_check_branch
        %1087 = sbr.rel (%p1085) target = $region64
      $region63: #{tpu_custom_call.1} parent=5 // pred_region
        %s1088 = ssub.s32 %s33, 2
        // Predicated region
        $region65: #{tpu_custom_call.1} parent=63 // pred_check
          %p1089 = pneg %p173
        $region66: #{tpu_custom_call.1} parent=63 // pred_check_branch
          %1091 = sbr.rel (%p1089) target = $region68
        $region67: #{tpu_custom_call.1} parent=63 // pred_region
          %s1092 = sand.u32 %s158, 1
          %s1093 = scalar_lea.sflag [#allocation8], %s1092
          %s1094 = sand.u32 %s158, 1
          %s1095 = smul.addr %s1094, 4
          %s1096 = scalar_lea.vmem [#allocation12], %s1095
          %1098 = dma.done %s1093, 64
        $region68: #{tpu_custom_call.1} parent=63 // pred_fallthru
          _
      $region64: #{tpu_custom_call.1} parent=5 // pred_fallthru
        _
    $region6: #{tpu_custom_call.1} parent=1 // loop_footer
      %s37 = sadd.s32 1, %s33
    $region7: #{tpu_custom_call.1} parent=1 // loop_footer_branch
      %32 = sbr.rel target = $region3
    $region8: #{tpu_custom_call.1} parent=1 // loop_exit
      _
    %1099 = vsyncpa [#allocation7], 1
    %s1100 = scalar_lea.sflag [#allocation7], 1
    %1101 = vsyncpa %s1100, 1
    %1102 = vsyncpa [#allocation10], 1
    %s1103 = scalar_lea.sflag [#allocation10], 1
    %1104 = vsyncpa %s1103, 1
    %1105 = vsyncpa [#allocation8], 1
    %s1106 = scalar_lea.sflag [#allocation8], 1
    %1107 = vsyncpa %s1106, 1

</llo_original>
